<compile_context>
chip_gen: v7x
topology: tpu7x:2x2x1
jax: 0.10.0
libtpu: 0.0.40
codegen_flags: <defaults>
</compile_context>

<pallas_src>
import math
import functools

import jax
import jax.numpy as jnp
from jax.experimental import pallas as pl
from jax.experimental.pallas import tpu as pltpu

MXU_LANES = 128          # lane-dense width for the layer-1 MXU matmul
OUT_W = 8                # narrow output width (3 real columns, padded to 8)
SP_ROWS = 16             # packed small-parameter slab rows
TILE_B_MAX = 2048        # batch-tile cap
VMEM_BUDGET = 12 << 20   # stay under v5e's 16 MiB scoped-VMEM default


def _act(r, activation):
    # `activation` is a static Python string -> only one branch is traced.
    if activation == "leaky_relu":
        return jnp.where(r > 0, r, 0.01 * r)
    elif activation == "elu":
        # exp(r) in the untaken branch may be inf for large r; the select
        # masks it (no NaN) — intentional.
        return jnp.where(r > 0, r, jnp.exp(r) - 1.0)
    elif activation == "sigmoid":
        # Exact sigmoid (pl.reciprocal(approx=True) would miss the 1e-5 tol).
        return 1.0 / (1.0 + jnp.exp(-r))
    return r


def nn3layer_kernel(x_ref, w1_ref, sp_ref, o_ref, *, activation):
    """x_ref: (TILE_B, F); w1_ref: (F, 128); sp_ref: (16, 8); o_ref: (TILE_B, 8).

    sp_ref rows: 0=b1, 1=b2, 2=b3, 3:6=W2, 6:9=W3 (real data in lanes 0..2,
    zeros elsewhere, so padded lanes never contaminate lanes 0..2).
    """
    x = x_ref[...]                      # (TILE_B, F)
    b1 = sp_ref[0:1, :]                 # (1, 8)
    b2 = sp_ref[1:2, :]
    b3 = sp_ref[2:3, :]
    w2 = sp_ref[3:6, :]                 # (3, 8)
    w3 = sp_ref[6:9, :]

    # ---- Layer 1: batched lane-dense matmul on the MXU, then narrow to the
    # 8 lanes that matter so every following op (VPU/EUP/store) is 16x smaller.
    r = jnp.dot(x, w1_ref[...], preferred_element_type=jnp.float32)  # (TILE_B, 128)
    h = r[:, :OUT_W] + b1                                            # (TILE_B, 8)
    h = _act(h, activation)

    # ---- Layer 2: (B,3)@(3,3) as unrolled VPU FMAs (no MXU round trip).
    h = (b2
         + h[:, 0:1] * w2[0:1, :]
         + h[:, 1:2] * w2[1:2, :]
         + h[:, 2:3] * w2[2:3, :])
    h = _act(h, activation)

    # ---- Layer 3: same VPU formulation.
    h = (b3
         + h[:, 0:1] * w3[0:1, :]
         + h[:, 1:2] * w3[1:2, :]
         + h[:, 2:3] * w3[2:3, :])
    h = _act(h, activation)

    h = jnp.clip(h, 0.0, 1.0)
    if activation == "elu":
        h = h + 1.0

    o_ref[...] = h                      # narrow (TILE_B, 8) store


def make_params(past_n_days, key):
    """Mirror SimplifiedLinear.reset_parameters: weight = const 0.001 with
    shape (in, out); bias ~ U(-1/sqrt(fan_in), 1/sqrt(fan_in)) where PyTorch's
    _calculate_fan_in_and_fan_out on an (in, out) weight gives
    fan_in = size(1) = out_features (= 3 for every layer here)."""
    dims = [(past_n_days * 4, 3), (3, 3), (3, 3)]
    params = []
    for i, (fin, fout) in enumerate(dims):
        w = jnp.full((fin, fout), 0.001, dtype=jnp.float32)
        bound = 1.0 / math.sqrt(fout)
        bkey = jax.random.fold_in(key, i)
        b = jax.random.uniform(bkey, (fout,), minval=-bound, maxval=bound,
                               dtype=jnp.float32)
        params.extend([w, b])
    return params


def pack_params(params):
    """Pack the 6 small tensors into 2 DMA-friendly arrays."""
    w1, b1, w2, b2, w3, b3 = params
    F = w1.shape[0]
    w1p = jnp.zeros((F, MXU_LANES), jnp.float32).at[:, :3].set(w1)
    small = jnp.zeros((SP_ROWS, OUT_W), jnp.float32)
    small = small.at[0, :3].set(b1.reshape(3))
    small = small.at[1, :3].set(b2.reshape(3))
    small = small.at[2, :3].set(b3.reshape(3))
    small = small.at[3:6, :3].set(w2)
    small = small.at[6:9, :3].set(w3)
    return w1p, small


def _choose_tile_b(B, F):
    """Largest batch tile under the VMEM budget, but >= 2 grid steps when the
    batch allows so v7x (2 TCs) can shard the 'parallel' axis across cores."""
    per_row = 2 * 4 * (F + OUT_W)              # double-buffered f32 x-row + out-row
    cap = min(TILE_B_MAX, VMEM_BUDGET // per_row)
    cap = max(8, (cap // 8) * 8)
    if B >= 2 * cap:
        return cap
    half = max(8, (((B + 1) // 2 + 7) // 8) * 8)
    return min(cap, half)


def reference_forward_batched(input_sird_values, params, activation="sigmoid"):
    """Pure-JAX reference (matches NN_3Layer.forward, batched)."""
    w1, b1, w2, b2, w3, b3 = params
    B = input_sird_values.shape[0]
    r = input_sird_values.reshape(B, -1).astype(jnp.float32)
    r = _act(r @ w1 + b1, activation)
    r = _act(r @ w2 + b2, activation)
    r = _act(r @ w3 + b3, activation)
    r = jnp.clip(r, 0.0, 1.0)
    if activation == "elu":
        r = r + 1.0
    return r


def nn_3layer_forward_batched(input_sird_values, params, activation="sigmoid",
                              min_pallas_batch=128):
    """input_sird_values: (B, past_n_days, 4) float32 -> (B, 3) float32."""
    B, past_n_days, _ = input_sird_values.shape
    F = past_n_days * 4

    if B < min_pallas_batch:
        # Kernel launch + padded-tile DMA is pure overhead at tiny B.
        return reference_forward_batched(input_sird_values, params, activation)

    x = input_sird_values.reshape(B, F).astype(jnp.float32)
    tile_b = _choose_tile_b(B, F)
    Bp = -(-B // tile_b) * tile_b
    if Bp != B:
        x = jnp.pad(x, ((0, Bp - B), (0, 0)))

    w1p, small = pack_params(params)
    kernel = functools.partial(nn3layer_kernel, activation=activation)

    # Cost estimate reflecting the padded MXU matmul and real per-step traffic
    # (resident W1/small slabs counted once).
    flops = 2 * Bp * F * MXU_LANES + 12 * Bp * OUT_W
    transcendentals = 3 * Bp * OUT_W if activation in ("sigmoid", "elu") else 0
    bytes_accessed = (4 * (Bp * F + Bp * OUT_W)
                      + 4 * (F * MXU_LANES + SP_ROWS * OUT_W))

    out = pl.pallas_call(
        kernel,
        out_shape=jax.ShapeDtypeStruct((Bp, OUT_W), jnp.float32),
        grid=(Bp // tile_b,),
        in_specs=[
            pl.BlockSpec((tile_b, F), lambda i: (i, 0)),        # x: tiled over batch
            pl.BlockSpec((F, MXU_LANES), lambda i: (0, 0)),     # padded W1 (resident)
            pl.BlockSpec((SP_ROWS, OUT_W), lambda i: (0, 0)),   # packed small params
        ],
        out_specs=pl.BlockSpec((tile_b, OUT_W), lambda i: (i, 0)),
        compiler_params=pltpu.CompilerParams(
            dimension_semantics=("parallel",)),
        cost_estimate=pl.CostEstimate(
            flops=flops,
            transcendentals=transcendentals,
            bytes_accessed=bytes_accessed),
    )(x, w1p, small)

    return out[:B, :3]


def nn_3layer_forward(input_sird_values, params, activation="sigmoid"):
    """Original module semantics: (past_n_days, 4) -> (3,)."""
    out = nn_3layer_forward_batched(input_sird_values[None], params,
                                    activation=activation)
    return out.reshape(3)


if __name__ == "__main__":
    past_n_days = 8
    key = jax.random.PRNGKey(0)
    xkey, pkey, bkey, ckey = jax.random.split(key, 4)

    params = make_params(past_n_days, pkey)

    # --- single-sample path (module's original signature; jnp fast path) ---
    x_single = jax.random.uniform(xkey, (past_n_days, 4), dtype=jnp.float32)
    out_single = jax.block_until_ready(
        nn_3layer_forward(x_single, params, activation="sigmoid"))
    ref_single = reference_forward_batched(x_single[None], params,
                                           activation="sigmoid").reshape(3)
    assert out_single.shape == (3,)
    assert jnp.allclose(out_single, ref_single, atol=1e-5, rtol=1e-5), (
        out_single, ref_single)

    # --- batched Pallas path: >=2 grid steps, narrow output ---
    B = 512
    x_batch = jax.random.uniform(
        bkey, (B, past_n_days, 4), minval=-2.0, maxval=2.0, dtype=jnp.float32)
    for act in ("sigmoid", "leaky_relu", "elu"):
        out_b = jax.block_until_ready(
            nn_3layer_forward_batched(x_batch, params, activation=act))
        ref_b = reference_forward_batched(x_batch, params, activation=act)
        assert out_b.shape == (B, 3)
        assert jnp.allclose(out_b, ref_b, atol=1e-5, rtol=1e-5), act

    # --- ragged batch (not a multiple of the tile) exercises the padding path ---
    B2 = 300
    x_ragged = jax.random.uniform(
        ckey, (B2, past_n_days, 4), minval=-2.0, maxval=2.0, dtype=jnp.float32)
    out_r = jax.block_until_ready(
        nn_3layer_forward_batched(x_ragged, params, activation="sigmoid"))
    ref_r = reference_forward_batched(x_ragged, params, activation="sigmoid")
    assert out_r.shape == (B2, 3)
    assert jnp.allclose(out_r, ref_r, atol=1e-5, rtol=1e-5)

    print("KERNEL_OK")
</pallas_src>

<mosaic_0001>
module attributes {stable_mosaic.version = 11 : i64} {
  func.func @nn3layer_kernel(%arg0: i32, %arg1: memref<256x32xf32, #tpu.memory_space<vmem>>, %arg2: memref<32x128xf32, #tpu.memory_space<vmem>>, %arg3: memref<16x8xf32, #tpu.memory_space<vmem>>, %arg4: memref<256x8xf32, #tpu.memory_space<vmem>>) attributes {dimension_semantics = [#tpu.dimension_semantics<parallel>], iteration_bounds = array<i64: 2>, scalar_prefetch = 0 : i64, scratch_operands = 0 : i64, tpu.core_type = #tpu.core_type<tc>, window_params = [{transform_indices = @transform_0, window_bounds = array<i64: 256, 32>}, {pipeline_mode = #tpu.pipeline_mode<synchronous>, transform_indices = @transform_1, window_bounds = array<i64: 32, 128>}, {pipeline_mode = #tpu.pipeline_mode<synchronous>, transform_indices = @transform_2, window_bounds = array<i64: 16, 8>}, {transform_indices = @transform_3, window_bounds = array<i64: 256, 8>}]} {
    %c0 = arith.constant 0 : index
    %c0_0 = arith.constant 0 : index
    %0 = vector.load %arg1[%c0, %c0_0] : memref<256x32xf32, #tpu.memory_space<vmem>>, vector<256x32xf32>
    %c0_1 = arith.constant 0 : index
    %c0_2 = arith.constant 0 : index
    %1 = vector.load %arg3[%c0_1, %c0_2] : memref<16x8xf32, #tpu.memory_space<vmem>>, vector<1x8xf32>
    %c1 = arith.constant 1 : index
    %c0_3 = arith.constant 0 : index
    %2 = vector.load %arg3[%c1, %c0_3] : memref<16x8xf32, #tpu.memory_space<vmem>>, vector<1x8xf32>
    %c2 = arith.constant 2 : index
    %c0_4 = arith.constant 0 : index
    %3 = vector.load %arg3[%c2, %c0_4] : memref<16x8xf32, #tpu.memory_space<vmem>>, vector<1x8xf32>
    %c3 = arith.constant 3 : index
    %c0_5 = arith.constant 0 : index
    %4 = vector.load %arg3[%c3, %c0_5] : memref<16x8xf32, #tpu.memory_space<vmem>>, vector<3x8xf32>
    %c6 = arith.constant 6 : index
    %c0_6 = arith.constant 0 : index
    %5 = vector.load %arg3[%c6, %c0_6] : memref<16x8xf32, #tpu.memory_space<vmem>>, vector<3x8xf32>
    %c0_7 = arith.constant 0 : index
    %c0_8 = arith.constant 0 : index
    %6 = vector.load %arg2[%c0_7, %c0_8] : memref<32x128xf32, #tpu.memory_space<vmem>>, vector<32x128xf32>
    %cst = arith.constant dense<0.000000e+00> : vector<256x128xf32>
    %7 = tpu.matmul %0, %6, %cst {dimension_numbers = #tpu.dot_dimension_numbers<[1], [0], [0], [1], [0, 0, 1, 1], [], []>} : vector<256x32xf32>, vector<32x128xf32>, vector<256x128xf32> -> vector<256x128xf32>
    %8 = vector.extract_strided_slice %7 {offsets = [0, 0], sizes = [256, 8], strides = [1, 1]} : vector<256x128xf32> to vector<256x8xf32>
    %9 = vector.broadcast %1 : vector<1x8xf32> to vector<256x8xf32>
    %10 = arith.addf %8, %9 : vector<256x8xf32>
    %cst_9 = arith.constant 0.000000e+00 : f32
    %11 = vector.broadcast %cst_9 : f32 to vector<256x8xf32>
    %12 = arith.subf %11, %10 : vector<256x8xf32>
    %13 = math.exp %12 : vector<256x8xf32>
    %cst_10 = arith.constant 1.000000e+00 : f32
    %14 = vector.broadcast %cst_10 : f32 to vector<256x8xf32>
    %15 = arith.addf %14, %13 : vector<256x8xf32>
    %cst_11 = arith.constant 1.000000e+00 : f32
    %16 = vector.broadcast %cst_11 : f32 to vector<256x8xf32>
    %17 = arith.divf %16, %15 : vector<256x8xf32>
    %18 = vector.extract_strided_slice %17 {offsets = [0, 0], sizes = [256, 1], strides = [1, 1]} : vector<256x8xf32> to vector<256x1xf32>
    %19 = vector.extract_strided_slice %4 {offsets = [0, 0], sizes = [1, 8], strides = [1, 1]} : vector<3x8xf32> to vector<1x8xf32>
    %20 = vector.broadcast %18 : vector<256x1xf32> to vector<256x8xf32>
    %21 = vector.broadcast %19 : vector<1x8xf32> to vector<256x8xf32>
    %22 = arith.mulf %20, %21 : vector<256x8xf32>
    %23 = vector.broadcast %2 : vector<1x8xf32> to vector<256x8xf32>
    %24 = arith.addf %23, %22 : vector<256x8xf32>
    %25 = vector.extract_strided_slice %17 {offsets = [0, 1], sizes = [256, 1], strides = [1, 1]} : vector<256x8xf32> to vector<256x1xf32>
    %26 = vector.extract_strided_slice %4 {offsets = [1, 0], sizes = [1, 8], strides = [1, 1]} : vector<3x8xf32> to vector<1x8xf32>
    %27 = vector.broadcast %25 : vector<256x1xf32> to vector<256x8xf32>
    %28 = vector.broadcast %26 : vector<1x8xf32> to vector<256x8xf32>
    %29 = arith.mulf %27, %28 : vector<256x8xf32>
    %30 = arith.addf %24, %29 : vector<256x8xf32>
    %31 = vector.extract_strided_slice %17 {offsets = [0, 2], sizes = [256, 1], strides = [1, 1]} : vector<256x8xf32> to vector<256x1xf32>
    %32 = vector.extract_strided_slice %4 {offsets = [2, 0], sizes = [1, 8], strides = [1, 1]} : vector<3x8xf32> to vector<1x8xf32>
    %33 = vector.broadcast %31 : vector<256x1xf32> to vector<256x8xf32>
    %34 = vector.broadcast %32 : vector<1x8xf32> to vector<256x8xf32>
    %35 = arith.mulf %33, %34 : vector<256x8xf32>
    %36 = arith.addf %30, %35 : vector<256x8xf32>
    %cst_12 = arith.constant 0.000000e+00 : f32
    %37 = vector.broadcast %cst_12 : f32 to vector<256x8xf32>
    %38 = arith.subf %37, %36 : vector<256x8xf32>
    %39 = math.exp %38 : vector<256x8xf32>
    %cst_13 = arith.constant 1.000000e+00 : f32
    %40 = vector.broadcast %cst_13 : f32 to vector<256x8xf32>
    %41 = arith.addf %40, %39 : vector<256x8xf32>
    %cst_14 = arith.constant 1.000000e+00 : f32
    %42 = vector.broadcast %cst_14 : f32 to vector<256x8xf32>
    %43 = arith.divf %42, %41 : vector<256x8xf32>
    %44 = vector.extract_strided_slice %43 {offsets = [0, 0], sizes = [256, 1], strides = [1, 1]} : vector<256x8xf32> to vector<256x1xf32>
    %45 = vector.extract_strided_slice %5 {offsets = [0, 0], sizes = [1, 8], strides = [1, 1]} : vector<3x8xf32> to vector<1x8xf32>
    %46 = vector.broadcast %44 : vector<256x1xf32> to vector<256x8xf32>
    %47 = vector.broadcast %45 : vector<1x8xf32> to vector<256x8xf32>
    %48 = arith.mulf %46, %47 : vector<256x8xf32>
    %49 = vector.broadcast %3 : vector<1x8xf32> to vector<256x8xf32>
    %50 = arith.addf %49, %48 : vector<256x8xf32>
    %51 = vector.extract_strided_slice %43 {offsets = [0, 1], sizes = [256, 1], strides = [1, 1]} : vector<256x8xf32> to vector<256x1xf32>
    %52 = vector.extract_strided_slice %5 {offsets = [1, 0], sizes = [1, 8], strides = [1, 1]} : vector<3x8xf32> to vector<1x8xf32>
    %53 = vector.broadcast %51 : vector<256x1xf32> to vector<256x8xf32>
    %54 = vector.broadcast %52 : vector<1x8xf32> to vector<256x8xf32>
    %55 = arith.mulf %53, %54 : vector<256x8xf32>
    %56 = arith.addf %50, %55 : vector<256x8xf32>
    %57 = vector.extract_strided_slice %43 {offsets = [0, 2], sizes = [256, 1], strides = [1, 1]} : vector<256x8xf32> to vector<256x1xf32>
    %58 = vector.extract_strided_slice %5 {offsets = [2, 0], sizes = [1, 8], strides = [1, 1]} : vector<3x8xf32> to vector<1x8xf32>
    %59 = vector.broadcast %57 : vector<256x1xf32> to vector<256x8xf32>
    %60 = vector.broadcast %58 : vector<1x8xf32> to vector<256x8xf32>
    %61 = arith.mulf %59, %60 : vector<256x8xf32>
    %62 = arith.addf %56, %61 : vector<256x8xf32>
    %cst_15 = arith.constant 0.000000e+00 : f32
    %63 = vector.broadcast %cst_15 : f32 to vector<256x8xf32>
    %64 = arith.subf %63, %62 : vector<256x8xf32>
    %65 = math.exp %64 : vector<256x8xf32>
    %cst_16 = arith.constant 1.000000e+00 : f32
    %66 = vector.broadcast %cst_16 : f32 to vector<256x8xf32>
    %67 = arith.addf %66, %65 : vector<256x8xf32>
    %cst_17 = arith.constant 1.000000e+00 : f32
    %68 = vector.broadcast %cst_17 : f32 to vector<256x8xf32>
    %69 = arith.divf %68, %67 : vector<256x8xf32>
    %cst_18 = arith.constant 0.000000e+00 : f32
    %cst_19 = arith.constant 1.000000e+00 : f32
    %70 = vector.broadcast %cst_18 : f32 to vector<256x8xf32>
    %71 = arith.maximumf %70, %69 : vector<256x8xf32>
    %72 = vector.broadcast %cst_19 : f32 to vector<256x8xf32>
    %73 = arith.minimumf %72, %71 : vector<256x8xf32>
    %c0_20 = arith.constant 0 : index
    %c0_21 = arith.constant 0 : index
    %74 = vector.load %arg4[%c0_20, %c0_21] : memref<256x8xf32, #tpu.memory_space<vmem>>, vector<256x8xf32>
    tpu.vector_store %arg4[%c0_20, %c0_21], %73 {strides = array<i32>} : memref<256x8xf32, #tpu.memory_space<vmem>>, vector<256x8xf32>,
    return
  }
  func.func @transform_0(%arg0: i32) -> (i32, i32) {
    %c0_i32 = arith.constant 0 : i32
    %c0_i32_0 = arith.constant 0 : i32
    return %arg0, %c0_i32 : i32, i32
  }
  func.func @transform_1(%arg0: i32) -> (i32, i32) {
    %c0_i32 = arith.constant 0 : i32
    %c0_i32_0 = arith.constant 0 : i32
    %c0_i32_1 = arith.constant 0 : i32
    return %c0_i32, %c0_i32_0 : i32, i32
  }
  func.func @transform_2(%arg0: i32) -> (i32, i32) {
    %c0_i32 = arith.constant 0 : i32
    %c0_i32_0 = arith.constant 0 : i32
    %c0_i32_1 = arith.constant 0 : i32
    return %c0_i32, %c0_i32_0 : i32, i32
  }
  func.func @transform_3(%arg0: i32) -> (i32, i32) {
    %c0_i32 = arith.constant 0 : i32
    %c0_i32_0 = arith.constant 0 : i32
    return %arg0, %c0_i32 : i32, i32
  }
}

</mosaic_0001>

<llo_original>
// kernel: tpu_custom_call.1
$region0: #{tpu_custom_call.1}
  #allocation0 [shape = 'u32[]', space=smem, size = 0x4, offset = 0x4, fixed_abs, tag = 'smem constant byte address 0x4 - core index']
  #allocation1 [shape = 'u32[144,128]{1,0:T(1,128)}', space=vmem, size = 0x12000, scoped, tag = 'internal scratch']
  %s0 = inlined_call_operand.vmem [shape: f32[512,32], index: 0, kind: input, shape index: {}]
  %s1 = inlined_call_operand.vmem [shape: f32[32,128], index: 1, kind: input, shape index: {}]
  %s2 = inlined_call_operand.vmem [shape: f32[16,8], index: 2, kind: input, shape index: {}]
  %s3 = inlined_call_operand.vmem [shape: f32[512,8], index: 3, kind: output, shape index: {}]
  %s4 = sld [smem:[#allocation0]]
  $region45: #{tpu_custom_call.1} parent=0
    _
  %s6 = ssub.s32 1, %s4
  %s7 = scalar_select 0, %s6, %s4
  loop: start=0, step=1, limit=4
  $region2: #{tpu_custom_call.1} parent=0 // loop_pre_header
    _
  $region3: #{tpu_custom_call.1} parent=0 // loop_header
    %s9 = sphi 0, %s13
    %p10 = scmp.ge.s32.totalorder %s9, 4
    %s19 = sphi 0, %s21
    %s22 = sphi 0, %s19
    %s23 = sphi 0, %s22
    %s39 = sphi 0, %s23
    %s43 = sphi 0, %s43
    %s45 = sphi 0, %s43
    %s46 = sphi 0, %s45
    %s60 = sphi 0, %s46
    %s64 = sphi 0, %s64
    %s66 = sphi 0, %s64
    %s67 = sphi 0, %s66
    %s81 = sphi 0, %s67
    %s87 = sphi 0, %s89
    %s90 = sphi 0, %s87
    %s91 = sphi 0, %s90
    %s107 = sphi 0, %s91
  $region4: #{tpu_custom_call.1} parent=0 // loop_header_branch
    %12 = sbr.rel (%p10) target = $region8
  $region5: #{tpu_custom_call.1} parent=0 // loop_body
    %s14 = ssub.s32 %s9, 1
    %s15 = ssub.s32 %s9, 2
    %s16 = sadd.s32 %s9, 1
    %s17 = ssub.s32 %s9, %s16
    %p18 = scmp.eq.s32.totalorder %s17, 0
    %s20 = sadd.s32 %s19, 1
    %s21 = scalar_select %p18, %s19, %s20
    %p24 = pneg %p18
    %p25 = scmp.eq.s32.totalorder %s9, 1
    %p26 = por %p24, %p25
    %p27 = scmp.ne.s32.totalorder %s19, %s22
    %p28 = scmp.eq.s32.totalorder %s9, 0
    %p29 = por %p27, %p28
    %p30 = scmp.ne.s32.totalorder %s19, %s22
    %p31 = scmp.eq.s32.totalorder %s14, 1
    %p32 = por %p30, %p31
    %p33 = scmp.ne.s32.totalorder %s22, %s23
    %p34 = scmp.eq.s32.totalorder %s14, 0
    %p35 = por %p33, %p34
    %p36 = scmp.ne.s32.totalorder %s22, %s23
    %p37 = scmp.eq.s32.totalorder %s15, 1
    %p38 = por %p36, %p37
    %p40 = scmp.ne.s32.totalorder %s23, %s39
    %p41 = scmp.eq.s32.totalorder %s15, 0
    %p42 = por %p40, %p41
    %s44 = sadd.s32 %s43, 1
    %p47 = scmp.eq.s32.totalorder %s9, 1
    %p48 = scmp.ne.s32.totalorder %s43, %s45
    %p49 = scmp.eq.s32.totalorder %s9, 0
    %p50 = por %p48, %p49
    %p51 = scmp.ne.s32.totalorder %s43, %s45
    %p52 = scmp.eq.s32.totalorder %s14, 1
    %p53 = por %p51, %p52
    %p54 = scmp.ne.s32.totalorder %s45, %s46
    %p55 = scmp.eq.s32.totalorder %s14, 0
    %p56 = por %p54, %p55
    %p57 = scmp.ne.s32.totalorder %s45, %s46
    %p58 = scmp.eq.s32.totalorder %s15, 1
    %p59 = por %p57, %p58
    %p61 = scmp.ne.s32.totalorder %s46, %s60
    %p62 = scmp.eq.s32.totalorder %s15, 0
    %p63 = por %p61, %p62
    %s65 = sadd.s32 %s64, 1
    %p68 = scmp.eq.s32.totalorder %s9, 1
    %p69 = scmp.ne.s32.totalorder %s64, %s66
    %p70 = scmp.eq.s32.totalorder %s9, 0
    %p71 = por %p69, %p70
    %p72 = scmp.ne.s32.totalorder %s64, %s66
    %p73 = scmp.eq.s32.totalorder %s14, 1
    %p74 = por %p72, %p73
    %p75 = scmp.ne.s32.totalorder %s66, %s67
    %p76 = scmp.eq.s32.totalorder %s14, 0
    %p77 = por %p75, %p76
    %p78 = scmp.ne.s32.totalorder %s66, %s67
    %p79 = scmp.eq.s32.totalorder %s15, 1
    %p80 = por %p78, %p79
    %p82 = scmp.ne.s32.totalorder %s67, %s81
    %p83 = scmp.eq.s32.totalorder %s15, 0
    %p84 = por %p82, %p83
    %s85 = ssub.s32 %s9, %s16
    %p86 = scmp.eq.s32.totalorder %s85, 0
    %s88 = sadd.s32 %s87, 1
    %s89 = scalar_select %p86, %s87, %s88
    %p92 = pneg %p86
    %p93 = scmp.eq.s32.totalorder %s9, 1
    %p94 = por %p92, %p93
    %p95 = scmp.ne.s32.totalorder %s87, %s90
    %p96 = scmp.eq.s32.totalorder %s9, 0
    %p97 = por %p95, %p96
    %p98 = scmp.ne.s32.totalorder %s87, %s90
    %p99 = scmp.eq.s32.totalorder %s14, 1
    %p100 = por %p98, %p99
    %p101 = scmp.ne.s32.totalorder %s90, %s91
    %p102 = scmp.eq.s32.totalorder %s14, 0
    %p103 = por %p101, %p102
    %p104 = scmp.ne.s32.totalorder %s90, %s91
    %p105 = scmp.eq.s32.totalorder %s15, 1
    %p106 = por %p104, %p105
    %p108 = scmp.ne.s32.totalorder %s91, %s107
    %p109 = scmp.eq.s32.totalorder %s15, 0
    %p110 = por %p108, %p109
    %p111 = scmp.le.s32.totalorder 1, %s9
    %p112 = scmp.lt.s32.totalorder %s9, 3
    %p113 = pnand %p111, %p112
    %p114 = pneg %p113
    // Predicated region
    $region9: #{tpu_custom_call.1} parent=5 // pred_check
      _
    $region10: #{tpu_custom_call.1} parent=5 // pred_check_branch
      %116 = sbr.rel (%p113) target = $region12
    $region11: #{tpu_custom_call.1} parent=5 // pred_region
      %s117 = ssub.s32 %s9, 1
      // Predicated region
      $region13: #{tpu_custom_call.1} parent=11 // pred_check
        %p118 = pneg %p56
      $region14: #{tpu_custom_call.1} parent=11 // pred_check_branch
        %120 = sbr.rel (%p118) target = $region16
      $region15: #{tpu_custom_call.1} parent=11 // pred_region
        _
      $region16: #{tpu_custom_call.1} parent=11 // pred_fallthru
        _
      // Predicated region
      $region17: #{tpu_custom_call.1} parent=11 // pred_check
        %p121 = pneg %p77
      $region18: #{tpu_custom_call.1} parent=11 // pred_check_branch
        %123 = sbr.rel (%p121) target = $region20
      $region19: #{tpu_custom_call.1} parent=11 // pred_region
        _
      $region20: #{tpu_custom_call.1} parent=11 // pred_fallthru
        _
    $region12: #{tpu_custom_call.1} parent=5 // pred_fallthru
      _
    %p124 = scmp.lt.s32.totalorder %s9, 2
    // Predicated region
    $region21: #{tpu_custom_call.1} parent=5 // pred_check
      %p125 = pneg %p124
    $region22: #{tpu_custom_call.1} parent=5 // pred_check_branch
      %127 = sbr.rel (%p125) target = $region24
    $region23: #{tpu_custom_call.1} parent=5 // pred_region
      // Predicated region
      $region25: #{tpu_custom_call.1} parent=23 // pred_check
        %p128 = pneg %p29
      $region26: #{tpu_custom_call.1} parent=23 // pred_check_branch
        %130 = sbr.rel (%p128) target = $region28
      $region27: #{tpu_custom_call.1} parent=23 // pred_region
        %s131 = smul.u32 32, %s9
        %p132 = scmp.lt.s32.totalorder %s131, 63
        %s133 = scalar_select %p132, %s131, 63
        %s134 = smul.addr %s133, 8
        %s135 = scalar_lea.vmem %s0, %s134
        %s136 = smul.u32 32, %s9
      $region28: #{tpu_custom_call.1} parent=23 // pred_fallthru
        _
    $region24: #{tpu_custom_call.1} parent=5 // pred_fallthru
      _
    %p137 = scmp.le.s32.totalorder 1, %s9
    %p138 = scmp.lt.s32.totalorder %s9, 3
    %p139 = pnand %p137, %p138
    %p140 = pneg %p139
    // Predicated region
    $region29: #{tpu_custom_call.1} parent=5 // pred_check
      _
    $region30: #{tpu_custom_call.1} parent=5 // pred_check_branch
      %142 = sbr.rel (%p139) target = $region32
    $region31: #{tpu_custom_call.1} parent=5 // pred_region
      %s143 = ssub.s32 %s9, 1
      %s144 = smul.u32 32, %s14
      %p145 = scmp.lt.s32.totalorder %s144, 63
      %s146 = scalar_select %p145, %s144, 63
      %s147 = smul.addr %s146, 8
      %s148 = scalar_lea.vmem %s0, %s147
      %p149 = pneg %p35
      %p150 = pneg %p32
      %p151 = pneg %p56
      %p152 = pneg %p53
      %p153 = pneg %p77
      %p154 = pneg %p74
      %p155 = pneg %p103
      %p156 = pneg %p100
      %s157 = smul.u32 32, %s14
      %p158 = scmp.lt.s32.totalorder %s157, 63
      %s159 = scalar_select %p158, %s157, 63
      %s160 = smul.addr %s159, 8
      %s161 = scalar_lea.vmem %s3, %s160
      %s162 = smul.u32 32, %s14
      %p163 = scmp.lt.s32.totalorder %s162, 63
      %s164 = scalar_select %p163, %s162, 63
      %s165 = smul.addr %s164, 8
      %s166 = scalar_lea.vmem %s0, %s165
      %s167 = smul.u32 32, %s14
      %s168 = smul.u32 32, %s14
      %p169 = scmp.lt.s32.totalorder %s168, 63
      %s170 = scalar_select %p169, %s168, 63
      %s171 = smul.addr %s170, 8
      %s172 = scalar_lea.vmem %s3, %s171
      %s173 = smul.u32 32, %s14
      %v174 = vld [vmem:[%s166] sm:$0xff]
      %v175 = vld [vmem:[%s166 + $0x8] sm:$0xff]
      %v176 = vld [vmem:[%s166 + $0x10] sm:$0xff]
      %v177 = vld [vmem:[%s166 + $0x18] sm:$0xff]
      %v178 = vld [vmem:[%s166 + $0x20] sm:$0xff]
      %v179 = vld [vmem:[%s166 + $0x28] sm:$0xff]
      %v180 = vld [vmem:[%s166 + $0x30] sm:$0xff]
      %v181 = vld [vmem:[%s166 + $0x38] sm:$0xff]
      %v182 = vld [vmem:[%s166 + $0x40] sm:$0xff]
      %v183 = vld [vmem:[%s166 + $0x48] sm:$0xff]
      %v184 = vld [vmem:[%s166 + $0x50] sm:$0xff]
      %v185 = vld [vmem:[%s166 + $0x58] sm:$0xff]
      %v186 = vld [vmem:[%s166 + $0x60] sm:$0xff]
      %v187 = vld [vmem:[%s166 + $0x68] sm:$0xff]
      %v188 = vld [vmem:[%s166 + $0x70] sm:$0xff]
      %v189 = vld [vmem:[%s166 + $0x78] sm:$0xff]
      %v190 = vld [vmem:[%s166 + $0x80] sm:$0xff]
      %v191 = vld [vmem:[%s166 + $0x88] sm:$0xff]
      %v192 = vld [vmem:[%s166 + $0x90] sm:$0xff]
      %v193 = vld [vmem:[%s166 + $0x98] sm:$0xff]
      %v194 = vld [vmem:[%s166 + $0xa0] sm:$0xff]
      %v195 = vld [vmem:[%s166 + $0xa8] sm:$0xff]
      %v196 = vld [vmem:[%s166 + $0xb0] sm:$0xff]
      %v197 = vld [vmem:[%s166 + $0xb8] sm:$0xff]
      %v198 = vld [vmem:[%s166 + $0xc0] sm:$0xff]
      %v199 = vld [vmem:[%s166 + $0xc8] sm:$0xff]
      %v200 = vld [vmem:[%s166 + $0xd0] sm:$0xff]
      %v201 = vld [vmem:[%s166 + $0xd8] sm:$0xff]
      %v202 = vld [vmem:[%s166 + $0xe0] sm:$0xff]
      %v203 = vld [vmem:[%s166 + $0xe8] sm:$0xff]
      %v204 = vld [vmem:[%s166 + $0xf0] sm:$0xff]
      %v205 = vld [vmem:[%s166 + $0xf8] sm:$0xff]
      %v206 = vld [vmem:[%s2] sm:$0x1]
      %v207 = vld [vmem:[%s2 + $0x1] sm:$0x1]
      %v208 = vld [vmem:[%s2 + $0x2] sm:$0x1]
      %v209 = vld [vmem:[%s2 + $0x3] sm:$0x7]
      %v210 = vld [vmem:[%s2 + $0x6] sm:$0x7]
      %v211 = vld [vmem:[%s1] sm:$0xff]
      %v212 = vld [vmem:[%s1 + $0x8] sm:$0xff]
      %v213 = vld [vmem:[%s1 + $0x10] sm:$0xff]
      %v214 = vld [vmem:[%s1 + $0x18] sm:$0xff]
      %vm215 = vcmask 261120
      %v217 = vsel %vm215, %v174, 0
      %v220 = vsel %vm215, %v175, 0
      %v223 = vsel %vm215, %v176, 0
      %v226 = vsel %vm215, %v177, 0
      %v229 = vsel %vm215, %v178, 0
      %v232 = vsel %vm215, %v179, 0
      %v235 = vsel %vm215, %v180, 0
      %v238 = vsel %vm215, %v181, 0
      %v241 = vsel %vm215, %v182, 0
      %v244 = vsel %vm215, %v183, 0
      %v247 = vsel %vm215, %v184, 0
      %v250 = vsel %vm215, %v185, 0
      %v253 = vsel %vm215, %v186, 0
      %v256 = vsel %vm215, %v187, 0
      %v259 = vsel %vm215, %v188, 0
      %v262 = vsel %vm215, %v189, 0
      %v265 = vsel %vm215, %v190, 0
      %v268 = vsel %vm215, %v191, 0
      %v271 = vsel %vm215, %v192, 0
      %v274 = vsel %vm215, %v193, 0
      %v277 = vsel %vm215, %v194, 0
      %v280 = vsel %vm215, %v195, 0
      %v283 = vsel %vm215, %v196, 0
      %v286 = vsel %vm215, %v197, 0
      %v289 = vsel %vm215, %v198, 0
      %v292 = vsel %vm215, %v199, 0
      %v295 = vsel %vm215, %v200, 0
      %v298 = vsel %vm215, %v201, 0
      %v301 = vsel %vm215, %v202, 0
      %v304 = vsel %vm215, %v203, 0
      %v307 = vsel %vm215, %v204, 0
      %v310 = vsel %vm215, %v205, 0
      %312 = vmatprep.subr.mxu0 0.0
      %313 = vmatpush1.msra.mxu0 %v211
      %314 = vmatprep.subr.mxu0 0.0
      %315 = vmatpush1.msra.mxu0 %v212
      %316 = vmatprep.subr.mxu0 0.0
      %317 = vmatpush1.msra.mxu0 %v213
      %318 = vmatprep.subr.mxu0 0.0
      %319 = vmatpush1.msra.mxu0 %v214
      %320 = vmatprep.subr.mxu0 0.0
      %321 = vmatpush1.msra.mxu0 0.0
      %322 = vmatprep.subr.mxu0 0.0
      %323 = vmatpush1.msra.mxu0 0.0
      %324 = vmatprep.subr.mxu0 0.0
      %325 = vmatpush1.msra.mxu0 0.0
      %326 = vmatprep.subr.mxu0 0.0
      %327 = vmatpush1.msra.mxu0 0.0
      %328 = vmatprep.subr.mxu0 0.0
      %329 = vmatpush1.msra.mxu0 0.0
      %330 = vmatprep.subr.mxu0 0.0
      %331 = vmatpush1.msra.mxu0 0.0
      %332 = vmatprep.subr.mxu0 0.0
      %333 = vmatpush1.msra.mxu0 0.0
      %334 = vmatprep.subr.mxu0 0.0
      %335 = vmatpush1.msra.mxu0 0.0
      %336 = vmatprep.subr.mxu0 0.0
      %337 = vmatpush1.msra.mxu0 0.0
      %338 = vmatprep.subr.mxu0 0.0
      %339 = vmatpush1.msra.mxu0 0.0
      %340 = vmatprep.subr.mxu0 0.0
      %341 = vmatpush1.msra.mxu0 0.0
      %342 = vmatprep.subr.mxu0 0.0
      %343 = vmatpush1.msra.mxu0 0.0
      %344 = vmatprep.subr.mxu0 0.0
      %345 = vmatpush1.msra.mxu0 0.0
      %346 = vmatprep.subr.mxu0 0.0
      %347 = vmatpush1.msra.mxu0 0.0
      %348 = vmatprep.subr.mxu0 0.0
      %349 = vmatpush1.msra.mxu0 0.0
      %350 = vmatprep.subr.mxu0 0.0
      %351 = vmatpush1.msra.mxu0 0.0
      %352 = vmatprep.subr.mxu0 0.0
      %353 = vmatpush1.msra.mxu0 0.0
      %354 = vmatprep.subr.mxu0 0.0
      %355 = vmatpush1.msra.mxu0 0.0
      %356 = vmatprep.subr.mxu0 0.0
      %357 = vmatpush1.msra.mxu0 0.0
      %358 = vmatprep.subr.mxu0 0.0
      %359 = vmatpush1.msra.mxu0 0.0
      %360 = vmatprep.subr.mxu0 0.0
      %361 = vmatpush1.msra.mxu0 0.0
      %362 = vmatprep.subr.mxu0 0.0
      %363 = vmatpush1.msra.mxu0 0.0
      %364 = vmatprep.subr.mxu0 0.0
      %365 = vmatpush1.msra.mxu0 0.0
      %366 = vmatprep.subr.mxu0 0.0
      %367 = vmatpush1.msra.mxu0 0.0
      %368 = vmatprep.subr.mxu0 0.0
      %369 = vmatpush1.msra.mxu0 0.0
      %370 = vmatprep.subr.mxu0 0.0
      %371 = vmatpush1.msra.mxu0 0.0
      %372 = vmatprep.subr.mxu0 0.0
      %373 = vmatpush1.msra.mxu0 0.0
      %374 = vmatprep.subr.mxu0 0.0
      %375 = vmatpush1.msra.mxu0 0.0
      %376 = vmatprep.mubr.f32.mxu0 0.0
      %377 = vmatmul.mubr.f32.gmra.mrb[0].mxu0 %v217
      %v378 = vpop.f32.mrb[0].mxu0
      %v379 = vadd.f32 0.0, %v378
      %v380 = vpop.f32.mrb[0].mxu0
      %381 = vmatprep.mubr.f32.mxu0 0.0
      %382 = vmatmul.mubr.f32.gmra.mrb[0].mxu0 %v220
      %v383 = vpop.f32.mrb[0].mxu0
      %v384 = vadd.f32 0.0, %v383
      %v385 = vpop.f32.mrb[0].mxu0
      %386 = vmatprep.mubr.f32.mxu0 0.0
      %387 = vmatmul.mubr.f32.gmra.mrb[0].mxu0 %v223
      %v388 = vpop.f32.mrb[0].mxu0
      %v389 = vadd.f32 0.0, %v388
      %v390 = vpop.f32.mrb[0].mxu0
      %391 = vmatprep.mubr.f32.mxu0 0.0
      %392 = vmatmul.mubr.f32.gmra.mrb[0].mxu0 %v226
      %v393 = vpop.f32.mrb[0].mxu0
      %v394 = vadd.f32 0.0, %v393
      %v395 = vpop.f32.mrb[0].mxu0
      %396 = vmatprep.mubr.f32.mxu0 0.0
      %397 = vmatmul.mubr.f32.gmra.mrb[0].mxu0 %v229
      %v398 = vpop.f32.mrb[0].mxu0
      %v399 = vadd.f32 0.0, %v398
      %v400 = vpop.f32.mrb[0].mxu0
      %401 = vmatprep.mubr.f32.mxu0 0.0
      %402 = vmatmul.mubr.f32.gmra.mrb[0].mxu0 %v232
      %v403 = vpop.f32.mrb[0].mxu0
      %v404 = vadd.f32 0.0, %v403
      %v405 = vpop.f32.mrb[0].mxu0
      %406 = vmatprep.mubr.f32.mxu0 0.0
      %407 = vmatmul.mubr.f32.gmra.mrb[0].mxu0 %v235
      %v408 = vpop.f32.mrb[0].mxu0
      %v409 = vadd.f32 0.0, %v408
      %v410 = vpop.f32.mrb[0].mxu0
      %411 = vmatprep.mubr.f32.mxu0 0.0
      %412 = vmatmul.mubr.f32.gmra.mrb[0].mxu0 %v238
      %v413 = vpop.f32.mrb[0].mxu0
      %v414 = vadd.f32 0.0, %v413
      %v415 = vpop.f32.mrb[0].mxu0
      %416 = vmatprep.mubr.f32.mxu0 0.0
      %417 = vmatmul.mubr.f32.gmra.mrb[0].mxu0 %v241
      %v418 = vpop.f32.mrb[0].mxu0
      %v419 = vadd.f32 0.0, %v418
      %v420 = vpop.f32.mrb[0].mxu0
      %421 = vmatprep.mubr.f32.mxu0 0.0
      %422 = vmatmul.mubr.f32.gmra.mrb[0].mxu0 %v244
      %v423 = vpop.f32.mrb[0].mxu0
      %v424 = vadd.f32 0.0, %v423
      %v425 = vpop.f32.mrb[0].mxu0
      %426 = vmatprep.mubr.f32.mxu0 0.0
      %427 = vmatmul.mubr.f32.gmra.mrb[0].mxu0 %v247
      %v428 = vpop.f32.mrb[0].mxu0
      %v429 = vadd.f32 0.0, %v428
      %v430 = vpop.f32.mrb[0].mxu0
      %431 = vmatprep.mubr.f32.mxu0 0.0
      %432 = vmatmul.mubr.f32.gmra.mrb[0].mxu0 %v250
      %v433 = vpop.f32.mrb[0].mxu0
      %v434 = vadd.f32 0.0, %v433
      %v435 = vpop.f32.mrb[0].mxu0
      %436 = vmatprep.mubr.f32.mxu0 0.0
      %437 = vmatmul.mubr.f32.gmra.mrb[0].mxu0 %v253
      %v438 = vpop.f32.mrb[0].mxu0
      %v439 = vadd.f32 0.0, %v438
      %v440 = vpop.f32.mrb[0].mxu0
      %441 = vmatprep.mubr.f32.mxu0 0.0
      %442 = vmatmul.mubr.f32.gmra.mrb[0].mxu0 %v256
      %v443 = vpop.f32.mrb[0].mxu0
      %v444 = vadd.f32 0.0, %v443
      %v445 = vpop.f32.mrb[0].mxu0
      %446 = vmatprep.mubr.f32.mxu0 0.0
      %447 = vmatmul.mubr.f32.gmra.mrb[0].mxu0 %v259
      %v448 = vpop.f32.mrb[0].mxu0
      %v449 = vadd.f32 0.0, %v448
      %v450 = vpop.f32.mrb[0].mxu0
      %451 = vmatprep.mubr.f32.mxu0 0.0
      %452 = vmatmul.mubr.f32.gmra.mrb[0].mxu0 %v262
      %v453 = vpop.f32.mrb[0].mxu0
      %v454 = vadd.f32 0.0, %v453
      %v455 = vpop.f32.mrb[0].mxu0
      %456 = vmatprep.mubr.f32.mxu0 0.0
      %457 = vmatmul.mubr.f32.gmra.mrb[0].mxu0 %v265
      %v458 = vpop.f32.mrb[0].mxu0
      %v459 = vadd.f32 0.0, %v458
      %v460 = vpop.f32.mrb[0].mxu0
      %461 = vmatprep.mubr.f32.mxu0 0.0
      %462 = vmatmul.mubr.f32.gmra.mrb[0].mxu0 %v268
      %v463 = vpop.f32.mrb[0].mxu0
      %v464 = vadd.f32 0.0, %v463
      %v465 = vpop.f32.mrb[0].mxu0
      %466 = vmatprep.mubr.f32.mxu0 0.0
      %467 = vmatmul.mubr.f32.gmra.mrb[0].mxu0 %v271
      %v468 = vpop.f32.mrb[0].mxu0
      %v469 = vadd.f32 0.0, %v468
      %v470 = vpop.f32.mrb[0].mxu0
      %471 = vmatprep.mubr.f32.mxu0 0.0
      %472 = vmatmul.mubr.f32.gmra.mrb[0].mxu0 %v274
      %v473 = vpop.f32.mrb[0].mxu0
      %v474 = vadd.f32 0.0, %v473
      %v475 = vpop.f32.mrb[0].mxu0
      %476 = vmatprep.mubr.f32.mxu0 0.0
      %477 = vmatmul.mubr.f32.gmra.mrb[0].mxu0 %v277
      %v478 = vpop.f32.mrb[0].mxu0
      %v479 = vadd.f32 0.0, %v478
      %v480 = vpop.f32.mrb[0].mxu0
      %481 = vmatprep.mubr.f32.mxu0 0.0
      %482 = vmatmul.mubr.f32.gmra.mrb[0].mxu0 %v280
      %v483 = vpop.f32.mrb[0].mxu0
      %v484 = vadd.f32 0.0, %v483
      %v485 = vpop.f32.mrb[0].mxu0
      %486 = vmatprep.mubr.f32.mxu0 0.0
      %487 = vmatmul.mubr.f32.gmra.mrb[0].mxu0 %v283
      %v488 = vpop.f32.mrb[0].mxu0
      %v489 = vadd.f32 0.0, %v488
      %v490 = vpop.f32.mrb[0].mxu0
      %491 = vmatprep.mubr.f32.mxu0 0.0
      %492 = vmatmul.mubr.f32.gmra.mrb[0].mxu0 %v286
      %v493 = vpop.f32.mrb[0].mxu0
      %v494 = vadd.f32 0.0, %v493
      %v495 = vpop.f32.mrb[0].mxu0
      %496 = vmatprep.mubr.f32.mxu0 0.0
      %497 = vmatmul.mubr.f32.gmra.mrb[0].mxu0 %v289
      %v498 = vpop.f32.mrb[0].mxu0
      %v499 = vadd.f32 0.0, %v498
      %v500 = vpop.f32.mrb[0].mxu0
      %501 = vmatprep.mubr.f32.mxu0 0.0
      %502 = vmatmul.mubr.f32.gmra.mrb[0].mxu0 %v292
      %v503 = vpop.f32.mrb[0].mxu0
      %v504 = vadd.f32 0.0, %v503
      %v505 = vpop.f32.mrb[0].mxu0
      %506 = vmatprep.mubr.f32.mxu0 0.0
      %507 = vmatmul.mubr.f32.gmra.mrb[0].mxu0 %v295
      %v508 = vpop.f32.mrb[0].mxu0
      %v509 = vadd.f32 0.0, %v508
      %v510 = vpop.f32.mrb[0].mxu0
      %511 = vmatprep.mubr.f32.mxu0 0.0
      %512 = vmatmul.mubr.f32.gmra.mrb[0].mxu0 %v298
      %v513 = vpop.f32.mrb[0].mxu0
      %v514 = vadd.f32 0.0, %v513
      %v515 = vpop.f32.mrb[0].mxu0
      %516 = vmatprep.mubr.f32.mxu0 0.0
      %517 = vmatmul.mubr.f32.gmra.mrb[0].mxu0 %v301
      %v518 = vpop.f32.mrb[0].mxu0
      %v519 = vadd.f32 0.0, %v518
      %v520 = vpop.f32.mrb[0].mxu0
      %521 = vmatprep.mubr.f32.mxu0 0.0
      %522 = vmatmul.mubr.f32.gmra.mrb[0].mxu0 %v304
      %v523 = vpop.f32.mrb[0].mxu0
      %v524 = vadd.f32 0.0, %v523
      %v525 = vpop.f32.mrb[0].mxu0
      %526 = vmatprep.mubr.f32.mxu0 0.0
      %527 = vmatmul.mubr.f32.gmra.mrb[0].mxu0 %v307
      %v528 = vpop.f32.mrb[0].mxu0
      %v529 = vadd.f32 0.0, %v528
      %v530 = vpop.f32.mrb[0].mxu0
      %531 = vmatprep.mubr.f32.mxu0 0.0
      %532 = vmatmul.mubr.f32.gmra.mrb[0].mxu0 %v310
      %v533 = vpop.f32.mrb[0].mxu0
      %v534 = vadd.f32 0.0, %v533
      %v535 = vpop.f32.mrb[0].mxu0
      %536 = vdwg.mxu0
      %v537 = vlaneseq
      %v538 = vshrl.u32 %v537, 7
      %v539 = vsub.s32 0, %v538
      %v540 = vrot.slane %v206, %v539
      %v541 = vadd.f32 %v379, %v540
      %v542 = vadd.f32 %v384, %v540
      %v543 = vadd.f32 %v389, %v540
      %v544 = vadd.f32 %v394, %v540
      %v545 = vadd.f32 %v399, %v540
      %v546 = vadd.f32 %v404, %v540
      %v547 = vadd.f32 %v409, %v540
      %v548 = vadd.f32 %v414, %v540
      %v549 = vadd.f32 %v419, %v540
      %v550 = vadd.f32 %v424, %v540
      %v551 = vadd.f32 %v429, %v540
      %v552 = vadd.f32 %v434, %v540
      %v553 = vadd.f32 %v439, %v540
      %v554 = vadd.f32 %v444, %v540
      %v555 = vadd.f32 %v449, %v540
      %v556 = vadd.f32 %v454, %v540
      %v557 = vadd.f32 %v459, %v540
      %v558 = vadd.f32 %v464, %v540
      %v559 = vadd.f32 %v469, %v540
      %v560 = vadd.f32 %v474, %v540
      %v561 = vadd.f32 %v479, %v540
      %v562 = vadd.f32 %v484, %v540
      %v563 = vadd.f32 %v489, %v540
      %v564 = vadd.f32 %v494, %v540
      %v565 = vadd.f32 %v499, %v540
      %v566 = vadd.f32 %v504, %v540
      %v567 = vadd.f32 %v509, %v540
      %v568 = vadd.f32 %v514, %v540
      %v569 = vadd.f32 %v519, %v540
      %v570 = vadd.f32 %v524, %v540
      %v571 = vadd.f32 %v529, %v540
      %v572 = vadd.f32 %v534, %v540
      %v573 = vsub.f32 0.0, %v541
      %v574 = vsub.f32 0.0, %v542
      %v575 = vsub.f32 0.0, %v543
      %v576 = vsub.f32 0.0, %v544
      %v577 = vsub.f32 0.0, %v545
      %v578 = vsub.f32 0.0, %v546
      %v579 = vsub.f32 0.0, %v547
      %v580 = vsub.f32 0.0, %v548
      %v581 = vsub.f32 0.0, %v549
      %v582 = vsub.f32 0.0, %v550
      %v583 = vsub.f32 0.0, %v551
      %v584 = vsub.f32 0.0, %v552
      %v585 = vsub.f32 0.0, %v553
      %v586 = vsub.f32 0.0, %v554
      %v587 = vsub.f32 0.0, %v555
      %v588 = vsub.f32 0.0, %v556
      %v589 = vsub.f32 0.0, %v557
      %v590 = vsub.f32 0.0, %v558
      %v591 = vsub.f32 0.0, %v559
      %v592 = vsub.f32 0.0, %v560
      %v593 = vsub.f32 0.0, %v561
      %v594 = vsub.f32 0.0, %v562
      %v595 = vsub.f32 0.0, %v563
      %v596 = vsub.f32 0.0, %v564
      %v597 = vsub.f32 0.0, %v565
      %v598 = vsub.f32 0.0, %v566
      %v599 = vsub.f32 0.0, %v567
      %v600 = vsub.f32 0.0, %v568
      %v601 = vsub.f32 0.0, %v569
      %v602 = vsub.f32 0.0, %v570
      %v603 = vsub.f32 0.0, %v571
      %v604 = vsub.f32 0.0, %v572
      %v605 = vmul.f32 %v573, 1.442695
      %v606 = vpow.pop %v605
      %v607 = vmul.f32 %v574, 1.442695
      %v608 = vpow.pop %v607
      %v609 = vmul.f32 %v575, 1.442695
      %v610 = vpow.pop %v609
      %v611 = vmul.f32 %v576, 1.442695
      %v612 = vpow.pop %v611
      %v613 = vmul.f32 %v577, 1.442695
      %v614 = vpow.pop %v613
      %v615 = vmul.f32 %v578, 1.442695
      %v616 = vpow.pop %v615
      %v617 = vmul.f32 %v579, 1.442695
      %v618 = vpow.pop %v617
      %v619 = vmul.f32 %v580, 1.442695
      %v620 = vpow.pop %v619
      %v621 = vmul.f32 %v581, 1.442695
      %v622 = vpow.pop %v621
      %v623 = vmul.f32 %v582, 1.442695
      %v624 = vpow.pop %v623
      %v625 = vmul.f32 %v583, 1.442695
      %v626 = vpow.pop %v625
      %v627 = vmul.f32 %v584, 1.442695
      %v628 = vpow.pop %v627
      %v629 = vmul.f32 %v585, 1.442695
      %v630 = vpow.pop %v629
      %v631 = vmul.f32 %v586, 1.442695
      %v632 = vpow.pop %v631
      %v633 = vmul.f32 %v587, 1.442695
      %v634 = vpow.pop %v633
      %v635 = vmul.f32 %v588, 1.442695
      %v636 = vpow.pop %v635
      %v637 = vmul.f32 %v589, 1.442695
      %v638 = vpow.pop %v637
      %v639 = vmul.f32 %v590, 1.442695
      %v640 = vpow.pop %v639
      %v641 = vmul.f32 %v591, 1.442695
      %v642 = vpow.pop %v641
      %v643 = vmul.f32 %v592, 1.442695
      %v644 = vpow.pop %v643
      %v645 = vmul.f32 %v593, 1.442695
      %v646 = vpow.pop %v645
      %v647 = vmul.f32 %v594, 1.442695
      %v648 = vpow.pop %v647
      %v649 = vmul.f32 %v595, 1.442695
      %v650 = vpow.pop %v649
      %v651 = vmul.f32 %v596, 1.442695
      %v652 = vpow.pop %v651
      %v653 = vmul.f32 %v597, 1.442695
      %v654 = vpow.pop %v653
      %v655 = vmul.f32 %v598, 1.442695
      %v656 = vpow.pop %v655
      %v657 = vmul.f32 %v599, 1.442695
      %v658 = vpow.pop %v657
      %v659 = vmul.f32 %v600, 1.442695
      %v660 = vpow.pop %v659
      %v661 = vmul.f32 %v601, 1.442695
      %v662 = vpow.pop %v661
      %v663 = vmul.f32 %v602, 1.442695
      %v664 = vpow.pop %v663
      %v665 = vmul.f32 %v603, 1.442695
      %v666 = vpow.pop %v665
      %v667 = vmul.f32 %v604, 1.442695
      %v668 = vpow.pop %v667
      %v669 = vadd.f32 %v606, 1.0
      %v670 = vadd.f32 %v608, 1.0
      %v671 = vadd.f32 %v610, 1.0
      %v672 = vadd.f32 %v612, 1.0
      %v673 = vadd.f32 %v614, 1.0
      %v674 = vadd.f32 %v616, 1.0
      %v675 = vadd.f32 %v618, 1.0
      %v676 = vadd.f32 %v620, 1.0
      %v677 = vadd.f32 %v622, 1.0
      %v678 = vadd.f32 %v624, 1.0
      %v679 = vadd.f32 %v626, 1.0
      %v680 = vadd.f32 %v628, 1.0
      %v681 = vadd.f32 %v630, 1.0
      %v682 = vadd.f32 %v632, 1.0
      %v683 = vadd.f32 %v634, 1.0
      %v684 = vadd.f32 %v636, 1.0
      %v685 = vadd.f32 %v638, 1.0
      %v686 = vadd.f32 %v640, 1.0
      %v687 = vadd.f32 %v642, 1.0
      %v688 = vadd.f32 %v644, 1.0
      %v689 = vadd.f32 %v646, 1.0
      %v690 = vadd.f32 %v648, 1.0
      %v691 = vadd.f32 %v650, 1.0
      %v692 = vadd.f32 %v652, 1.0
      %v693 = vadd.f32 %v654, 1.0
      %v694 = vadd.f32 %v656, 1.0
      %v695 = vadd.f32 %v658, 1.0
      %v696 = vadd.f32 %v660, 1.0
      %v697 = vadd.f32 %v662, 1.0
      %v698 = vadd.f32 %v664, 1.0
      %v699 = vadd.f32 %v666, 1.0
      %v700 = vadd.f32 %v668, 1.0
      %v701 = vrcp.pop %v669
      %v702 = vmul.f32 1.0, %v701
      %v703 = vrcp.pop %v670
      %v704 = vmul.f32 1.0, %v703
      %v705 = vrcp.pop %v671
      %v706 = vmul.f32 1.0, %v705
      %v707 = vrcp.pop %v672
      %v708 = vmul.f32 1.0, %v707
      %v709 = vrcp.pop %v673
      %v710 = vmul.f32 1.0, %v709
      %v711 = vrcp.pop %v674
      %v712 = vmul.f32 1.0, %v711
      %v713 = vrcp.pop %v675
      %v714 = vmul.f32 1.0, %v713
      %v715 = vrcp.pop %v676
      %v716 = vmul.f32 1.0, %v715
      %v717 = vrcp.pop %v677
      %v718 = vmul.f32 1.0, %v717
      %v719 = vrcp.pop %v678
      %v720 = vmul.f32 1.0, %v719
      %v721 = vrcp.pop %v679
      %v722 = vmul.f32 1.0, %v721
      %v723 = vrcp.pop %v680
      %v724 = vmul.f32 1.0, %v723
      %v725 = vrcp.pop %v681
      %v726 = vmul.f32 1.0, %v725
      %v727 = vrcp.pop %v682
      %v728 = vmul.f32 1.0, %v727
      %v729 = vrcp.pop %v683
      %v730 = vmul.f32 1.0, %v729
      %v731 = vrcp.pop %v684
      %v732 = vmul.f32 1.0, %v731
      %v733 = vrcp.pop %v685
      %v734 = vmul.f32 1.0, %v733
      %v735 = vrcp.pop %v686
      %v736 = vmul.f32 1.0, %v735
      %v737 = vrcp.pop %v687
      %v738 = vmul.f32 1.0, %v737
      %v739 = vrcp.pop %v688
      %v740 = vmul.f32 1.0, %v739
      %v741 = vrcp.pop %v689
      %v742 = vmul.f32 1.0, %v741
      %v743 = vrcp.pop %v690
      %v744 = vmul.f32 1.0, %v743
      %v745 = vrcp.pop %v691
      %v746 = vmul.f32 1.0, %v745
      %v747 = vrcp.pop %v692
      %v748 = vmul.f32 1.0, %v747
      %v749 = vrcp.pop %v693
      %v750 = vmul.f32 1.0, %v749
      %v751 = vrcp.pop %v694
      %v752 = vmul.f32 1.0, %v751
      %v753 = vrcp.pop %v695
      %v754 = vmul.f32 1.0, %v753
      %v755 = vrcp.pop %v696
      %v756 = vmul.f32 1.0, %v755
      %v757 = vrcp.pop %v697
      %v758 = vmul.f32 1.0, %v757
      %v759 = vrcp.pop %v698
      %v760 = vmul.f32 1.0, %v759
      %v761 = vrcp.pop %v699
      %v762 = vmul.f32 1.0, %v761
      %v763 = vrcp.pop %v700
      %v764 = vmul.f32 1.0, %v763
      %766 = vset.pattern.permute.xlu0 0
      %767 = vperm.xlu0 %766, %v702
      %v768 = vpop.permute.xlu0 %767
      %771 = vset.pattern.permute.xlu0 0
      %772 = vperm.xlu0 %771, %v704
      %v773 = vpop.permute.xlu0 %772
      %776 = vset.pattern.permute.xlu0 0
      %777 = vperm.xlu0 %776, %v706
      %v778 = vpop.permute.xlu0 %777
      %781 = vset.pattern.permute.xlu0 0
      %782 = vperm.xlu0 %781, %v708
      %v783 = vpop.permute.xlu0 %782
      %786 = vset.pattern.permute.xlu0 0
      %787 = vperm.xlu0 %786, %v710
      %v788 = vpop.permute.xlu0 %787
      %791 = vset.pattern.permute.xlu0 0
      %792 = vperm.xlu0 %791, %v712
      %v793 = vpop.permute.xlu0 %792
      %796 = vset.pattern.permute.xlu0 0
      %797 = vperm.xlu0 %796, %v714
      %v798 = vpop.permute.xlu0 %797
      %801 = vset.pattern.permute.xlu0 0
      %802 = vperm.xlu0 %801, %v716
      %v803 = vpop.permute.xlu0 %802
      %806 = vset.pattern.permute.xlu0 0
      %807 = vperm.xlu0 %806, %v718
      %v808 = vpop.permute.xlu0 %807
      %811 = vset.pattern.permute.xlu0 0
      %812 = vperm.xlu0 %811, %v720
      %v813 = vpop.permute.xlu0 %812
      %816 = vset.pattern.permute.xlu0 0
      %817 = vperm.xlu0 %816, %v722
      %v818 = vpop.permute.xlu0 %817
      %821 = vset.pattern.permute.xlu0 0
      %822 = vperm.xlu0 %821, %v724
      %v823 = vpop.permute.xlu0 %822
      %826 = vset.pattern.permute.xlu0 0
      %827 = vperm.xlu0 %826, %v726
      %v828 = vpop.permute.xlu0 %827
      %831 = vset.pattern.permute.xlu0 0
      %832 = vperm.xlu0 %831, %v728
      %v833 = vpop.permute.xlu0 %832
      %836 = vset.pattern.permute.xlu0 0
      %837 = vperm.xlu0 %836, %v730
      %v838 = vpop.permute.xlu0 %837
      %841 = vset.pattern.permute.xlu0 0
      %842 = vperm.xlu0 %841, %v732
      %v843 = vpop.permute.xlu0 %842
      %846 = vset.pattern.permute.xlu0 0
      %847 = vperm.xlu0 %846, %v734
      %v848 = vpop.permute.xlu0 %847
      %851 = vset.pattern.permute.xlu0 0
      %852 = vperm.xlu0 %851, %v736
      %v853 = vpop.permute.xlu0 %852
      %856 = vset.pattern.permute.xlu0 0
      %857 = vperm.xlu0 %856, %v738
      %v858 = vpop.permute.xlu0 %857
      %861 = vset.pattern.permute.xlu0 0
      %862 = vperm.xlu0 %861, %v740
      %v863 = vpop.permute.xlu0 %862
      %866 = vset.pattern.permute.xlu0 0
      %867 = vperm.xlu0 %866, %v742
      %v868 = vpop.permute.xlu0 %867
      %871 = vset.pattern.permute.xlu0 0
      %872 = vperm.xlu0 %871, %v744
      %v873 = vpop.permute.xlu0 %872
      %876 = vset.pattern.permute.xlu0 0
      %877 = vperm.xlu0 %876, %v746
      %v878 = vpop.permute.xlu0 %877
      %881 = vset.pattern.permute.xlu0 0
      %882 = vperm.xlu0 %881, %v748
      %v883 = vpop.permute.xlu0 %882
      %886 = vset.pattern.permute.xlu0 0
      %887 = vperm.xlu0 %886, %v750
      %v888 = vpop.permute.xlu0 %887
      %891 = vset.pattern.permute.xlu0 0
      %892 = vperm.xlu0 %891, %v752
      %v893 = vpop.permute.xlu0 %892
      %896 = vset.pattern.permute.xlu0 0
      %897 = vperm.xlu0 %896, %v754
      %v898 = vpop.permute.xlu0 %897
      %901 = vset.pattern.permute.xlu0 0
      %902 = vperm.xlu0 %901, %v756
      %v903 = vpop.permute.xlu0 %902
      %906 = vset.pattern.permute.xlu0 0
      %907 = vperm.xlu0 %906, %v758
      %v908 = vpop.permute.xlu0 %907
      %911 = vset.pattern.permute.xlu0 0
      %912 = vperm.xlu0 %911, %v760
      %v913 = vpop.permute.xlu0 %912
      %916 = vset.pattern.permute.xlu0 0
      %917 = vperm.xlu0 %916, %v762
      %v918 = vpop.permute.xlu0 %917
      %921 = vset.pattern.permute.xlu0 0
      %922 = vperm.xlu0 %921, %v764
      %v923 = vpop.permute.xlu0 %922
      %v925 = vlaneseq
      %v926 = vshrl.u32 %v925, 7
      %v927 = vsub.s32 0, %v926
      %v928 = vrot.slane %v209, %v927
      %v929 = vmul.f32 %v768, %v928
      %v930 = vmul.f32 %v773, %v928
      %v931 = vmul.f32 %v778, %v928
      %v932 = vmul.f32 %v783, %v928
      %v933 = vmul.f32 %v788, %v928
      %v934 = vmul.f32 %v793, %v928
      %v935 = vmul.f32 %v798, %v928
      %v936 = vmul.f32 %v803, %v928
      %v937 = vmul.f32 %v808, %v928
      %v938 = vmul.f32 %v813, %v928
      %v939 = vmul.f32 %v818, %v928
      %v940 = vmul.f32 %v823, %v928
      %v941 = vmul.f32 %v828, %v928
      %v942 = vmul.f32 %v833, %v928
      %v943 = vmul.f32 %v838, %v928
      %v944 = vmul.f32 %v843, %v928
      %v945 = vmul.f32 %v848, %v928
      %v946 = vmul.f32 %v853, %v928
      %v947 = vmul.f32 %v858, %v928
      %v948 = vmul.f32 %v863, %v928
      %v949 = vmul.f32 %v868, %v928
      %v950 = vmul.f32 %v873, %v928
      %v951 = vmul.f32 %v878, %v928
      %v952 = vmul.f32 %v883, %v928
      %v953 = vmul.f32 %v888, %v928
      %v954 = vmul.f32 %v893, %v928
      %v955 = vmul.f32 %v898, %v928
      %v956 = vmul.f32 %v903, %v928
      %v957 = vmul.f32 %v908, %v928
      %v958 = vmul.f32 %v913, %v928
      %v959 = vmul.f32 %v918, %v928
      %v960 = vmul.f32 %v923, %v928
      %v961 = vlaneseq
      %v962 = vshrl.u32 %v961, 7
      %v963 = vsub.s32 0, %v962
      %v964 = vrot.slane %v207, %v963
      %v965 = vadd.f32 %v964, %v929
      %v966 = vadd.f32 %v964, %v930
      %v967 = vadd.f32 %v964, %v931
      %v968 = vadd.f32 %v964, %v932
      %v969 = vadd.f32 %v964, %v933
      %v970 = vadd.f32 %v964, %v934
      %v971 = vadd.f32 %v964, %v935
      %v972 = vadd.f32 %v964, %v936
      %v973 = vadd.f32 %v964, %v937
      %v974 = vadd.f32 %v964, %v938
      %v975 = vadd.f32 %v964, %v939
      %v976 = vadd.f32 %v964, %v940
      %v977 = vadd.f32 %v964, %v941
      %v978 = vadd.f32 %v964, %v942
      %v979 = vadd.f32 %v964, %v943
      %v980 = vadd.f32 %v964, %v944
      %v981 = vadd.f32 %v964, %v945
      %v982 = vadd.f32 %v964, %v946
      %v983 = vadd.f32 %v964, %v947
      %v984 = vadd.f32 %v964, %v948
      %v985 = vadd.f32 %v964, %v949
      %v986 = vadd.f32 %v964, %v950
      %v987 = vadd.f32 %v964, %v951
      %v988 = vadd.f32 %v964, %v952
      %v989 = vadd.f32 %v964, %v953
      %v990 = vadd.f32 %v964, %v954
      %v991 = vadd.f32 %v964, %v955
      %v992 = vadd.f32 %v964, %v956
      %v993 = vadd.f32 %v964, %v957
      %v994 = vadd.f32 %v964, %v958
      %v995 = vadd.f32 %v964, %v959
      %v996 = vadd.f32 %v964, %v960
      %997 = vset.pattern.permute.xlu0 1
      %998 = vperm.xlu0 %997, %v702
      %v999 = vpop.permute.xlu0 %998
      %1001 = vset.pattern.permute.xlu0 1
      %1002 = vperm.xlu0 %1001, %v704
      %v1003 = vpop.permute.xlu0 %1002
      %1005 = vset.pattern.permute.xlu0 1
      %1006 = vperm.xlu0 %1005, %v706
      %v1007 = vpop.permute.xlu0 %1006
      %1009 = vset.pattern.permute.xlu0 1
      %1010 = vperm.xlu0 %1009, %v708
      %v1011 = vpop.permute.xlu0 %1010
      %1013 = vset.pattern.permute.xlu0 1
      %1014 = vperm.xlu0 %1013, %v710
      %v1015 = vpop.permute.xlu0 %1014
      %1017 = vset.pattern.permute.xlu0 1
      %1018 = vperm.xlu0 %1017, %v712
      %v1019 = vpop.permute.xlu0 %1018
      %1021 = vset.pattern.permute.xlu0 1
      %1022 = vperm.xlu0 %1021, %v714
      %v1023 = vpop.permute.xlu0 %1022
      %1025 = vset.pattern.permute.xlu0 1
      %1026 = vperm.xlu0 %1025, %v716
      %v1027 = vpop.permute.xlu0 %1026
      %1029 = vset.pattern.permute.xlu0 1
      %1030 = vperm.xlu0 %1029, %v718
      %v1031 = vpop.permute.xlu0 %1030
      %1033 = vset.pattern.permute.xlu0 1
      %1034 = vperm.xlu0 %1033, %v720
      %v1035 = vpop.permute.xlu0 %1034
      %1037 = vset.pattern.permute.xlu0 1
      %1038 = vperm.xlu0 %1037, %v722
      %v1039 = vpop.permute.xlu0 %1038
      %1041 = vset.pattern.permute.xlu0 1
      %1042 = vperm.xlu0 %1041, %v724
      %v1043 = vpop.permute.xlu0 %1042
      %1045 = vset.pattern.permute.xlu0 1
      %1046 = vperm.xlu0 %1045, %v726
      %v1047 = vpop.permute.xlu0 %1046
      %1049 = vset.pattern.permute.xlu0 1
      %1050 = vperm.xlu0 %1049, %v728
      %v1051 = vpop.permute.xlu0 %1050
      %1053 = vset.pattern.permute.xlu0 1
      %1054 = vperm.xlu0 %1053, %v730
      %v1055 = vpop.permute.xlu0 %1054
      %1057 = vset.pattern.permute.xlu0 1
      %1058 = vperm.xlu0 %1057, %v732
      %v1059 = vpop.permute.xlu0 %1058
      %1061 = vset.pattern.permute.xlu0 1
      %1062 = vperm.xlu0 %1061, %v734
      %v1063 = vpop.permute.xlu0 %1062
      %1065 = vset.pattern.permute.xlu0 1
      %1066 = vperm.xlu0 %1065, %v736
      %v1067 = vpop.permute.xlu0 %1066
      %1069 = vset.pattern.permute.xlu0 1
      %1070 = vperm.xlu0 %1069, %v738
      %v1071 = vpop.permute.xlu0 %1070
      %1073 = vset.pattern.permute.xlu0 1
      %1074 = vperm.xlu0 %1073, %v740
      %v1075 = vpop.permute.xlu0 %1074
      %1077 = vset.pattern.permute.xlu0 1
      %1078 = vperm.xlu0 %1077, %v742
      %v1079 = vpop.permute.xlu0 %1078
      %1081 = vset.pattern.permute.xlu0 1
      %1082 = vperm.xlu0 %1081, %v744
      %v1083 = vpop.permute.xlu0 %1082
      %1085 = vset.pattern.permute.xlu0 1
      %1086 = vperm.xlu0 %1085, %v746
      %v1087 = vpop.permute.xlu0 %1086
      %1089 = vset.pattern.permute.xlu0 1
      %1090 = vperm.xlu0 %1089, %v748
      %v1091 = vpop.permute.xlu0 %1090
      %1093 = vset.pattern.permute.xlu0 1
      %1094 = vperm.xlu0 %1093, %v750
      %v1095 = vpop.permute.xlu0 %1094
      %1097 = vset.pattern.permute.xlu0 1
      %1098 = vperm.xlu0 %1097, %v752
      %v1099 = vpop.permute.xlu0 %1098
      %1101 = vset.pattern.permute.xlu0 1
      %1102 = vperm.xlu0 %1101, %v754
      %v1103 = vpop.permute.xlu0 %1102
      %1105 = vset.pattern.permute.xlu0 1
      %1106 = vperm.xlu0 %1105, %v756
      %v1107 = vpop.permute.xlu0 %1106
      %1109 = vset.pattern.permute.xlu0 1
      %1110 = vperm.xlu0 %1109, %v758
      %v1111 = vpop.permute.xlu0 %1110
      %1113 = vset.pattern.permute.xlu0 1
      %1114 = vperm.xlu0 %1113, %v760
      %v1115 = vpop.permute.xlu0 %1114
      %1117 = vset.pattern.permute.xlu0 1
      %1118 = vperm.xlu0 %1117, %v762
      %v1119 = vpop.permute.xlu0 %1118
      %1121 = vset.pattern.permute.xlu0 1
      %1122 = vperm.xlu0 %1121, %v764
      %v1123 = vpop.permute.xlu0 %1122
      %v1125 = vlaneseq
      %v1126 = vshrl.u32 %v1125, 7
      %v1127 = vsub.s32 1, %v1126
      %v1128 = vrot.slane %v209, %v1127
      %v1129 = vmul.f32 %v999, %v1128
      %v1130 = vmul.f32 %v1003, %v1128
      %v1131 = vmul.f32 %v1007, %v1128
      %v1132 = vmul.f32 %v1011, %v1128
      %v1133 = vmul.f32 %v1015, %v1128
      %v1134 = vmul.f32 %v1019, %v1128
      %v1135 = vmul.f32 %v1023, %v1128
      %v1136 = vmul.f32 %v1027, %v1128
      %v1137 = vmul.f32 %v1031, %v1128
      %v1138 = vmul.f32 %v1035, %v1128
      %v1139 = vmul.f32 %v1039, %v1128
      %v1140 = vmul.f32 %v1043, %v1128
      %v1141 = vmul.f32 %v1047, %v1128
      %v1142 = vmul.f32 %v1051, %v1128
      %v1143 = vmul.f32 %v1055, %v1128
      %v1144 = vmul.f32 %v1059, %v1128
      %v1145 = vmul.f32 %v1063, %v1128
      %v1146 = vmul.f32 %v1067, %v1128
      %v1147 = vmul.f32 %v1071, %v1128
      %v1148 = vmul.f32 %v1075, %v1128
      %v1149 = vmul.f32 %v1079, %v1128
      %v1150 = vmul.f32 %v1083, %v1128
      %v1151 = vmul.f32 %v1087, %v1128
      %v1152 = vmul.f32 %v1091, %v1128
      %v1153 = vmul.f32 %v1095, %v1128
      %v1154 = vmul.f32 %v1099, %v1128
      %v1155 = vmul.f32 %v1103, %v1128
      %v1156 = vmul.f32 %v1107, %v1128
      %v1157 = vmul.f32 %v1111, %v1128
      %v1158 = vmul.f32 %v1115, %v1128
      %v1159 = vmul.f32 %v1119, %v1128
      %v1160 = vmul.f32 %v1123, %v1128
      %v1161 = vadd.f32 %v965, %v1129
      %v1162 = vadd.f32 %v966, %v1130
      %v1163 = vadd.f32 %v967, %v1131
      %v1164 = vadd.f32 %v968, %v1132
      %v1165 = vadd.f32 %v969, %v1133
      %v1166 = vadd.f32 %v970, %v1134
      %v1167 = vadd.f32 %v971, %v1135
      %v1168 = vadd.f32 %v972, %v1136
      %v1169 = vadd.f32 %v973, %v1137
      %v1170 = vadd.f32 %v974, %v1138
      %v1171 = vadd.f32 %v975, %v1139
      %v1172 = vadd.f32 %v976, %v1140
      %v1173 = vadd.f32 %v977, %v1141
      %v1174 = vadd.f32 %v978, %v1142
      %v1175 = vadd.f32 %v979, %v1143
      %v1176 = vadd.f32 %v980, %v1144
      %v1177 = vadd.f32 %v981, %v1145
      %v1178 = vadd.f32 %v982, %v1146
      %v1179 = vadd.f32 %v983, %v1147
      %v1180 = vadd.f32 %v984, %v1148
      %v1181 = vadd.f32 %v985, %v1149
      %v1182 = vadd.f32 %v986, %v1150
      %v1183 = vadd.f32 %v987, %v1151
      %v1184 = vadd.f32 %v988, %v1152
      %v1185 = vadd.f32 %v989, %v1153
      %v1186 = vadd.f32 %v990, %v1154
      %v1187 = vadd.f32 %v991, %v1155
      %v1188 = vadd.f32 %v992, %v1156
      %v1189 = vadd.f32 %v993, %v1157
      %v1190 = vadd.f32 %v994, %v1158
      %v1191 = vadd.f32 %v995, %v1159
      %v1192 = vadd.f32 %v996, %v1160
      %1193 = vset.pattern.permute.xlu0 2
      %1194 = vperm.xlu0 %1193, %v702
      %v1195 = vpop.permute.xlu0 %1194
      %1197 = vset.pattern.permute.xlu0 2
      %1198 = vperm.xlu0 %1197, %v704
      %v1199 = vpop.permute.xlu0 %1198
      %1201 = vset.pattern.permute.xlu0 2
      %1202 = vperm.xlu0 %1201, %v706
      %v1203 = vpop.permute.xlu0 %1202
      %1205 = vset.pattern.permute.xlu0 2
      %1206 = vperm.xlu0 %1205, %v708
      %v1207 = vpop.permute.xlu0 %1206
      %1209 = vset.pattern.permute.xlu0 2
      %1210 = vperm.xlu0 %1209, %v710
      %v1211 = vpop.permute.xlu0 %1210
      %1213 = vset.pattern.permute.xlu0 2
      %1214 = vperm.xlu0 %1213, %v712
      %v1215 = vpop.permute.xlu0 %1214
      %1217 = vset.pattern.permute.xlu0 2
      %1218 = vperm.xlu0 %1217, %v714
      %v1219 = vpop.permute.xlu0 %1218
      %1221 = vset.pattern.permute.xlu0 2
      %1222 = vperm.xlu0 %1221, %v716
      %v1223 = vpop.permute.xlu0 %1222
      %1225 = vset.pattern.permute.xlu0 2
      %1226 = vperm.xlu0 %1225, %v718
      %v1227 = vpop.permute.xlu0 %1226
      %1229 = vset.pattern.permute.xlu0 2
      %1230 = vperm.xlu0 %1229, %v720
      %v1231 = vpop.permute.xlu0 %1230
      %1233 = vset.pattern.permute.xlu0 2
      %1234 = vperm.xlu0 %1233, %v722
      %v1235 = vpop.permute.xlu0 %1234
      %1237 = vset.pattern.permute.xlu0 2
      %1238 = vperm.xlu0 %1237, %v724
      %v1239 = vpop.permute.xlu0 %1238
      %1241 = vset.pattern.permute.xlu0 2
      %1242 = vperm.xlu0 %1241, %v726
      %v1243 = vpop.permute.xlu0 %1242
      %1245 = vset.pattern.permute.xlu0 2
      %1246 = vperm.xlu0 %1245, %v728
      %v1247 = vpop.permute.xlu0 %1246
      %1249 = vset.pattern.permute.xlu0 2
      %1250 = vperm.xlu0 %1249, %v730
      %v1251 = vpop.permute.xlu0 %1250
      %1253 = vset.pattern.permute.xlu0 2
      %1254 = vperm.xlu0 %1253, %v732
      %v1255 = vpop.permute.xlu0 %1254
      %1257 = vset.pattern.permute.xlu0 2
      %1258 = vperm.xlu0 %1257, %v734
      %v1259 = vpop.permute.xlu0 %1258
      %1261 = vset.pattern.permute.xlu0 2
      %1262 = vperm.xlu0 %1261, %v736
      %v1263 = vpop.permute.xlu0 %1262
      %1265 = vset.pattern.permute.xlu0 2
      %1266 = vperm.xlu0 %1265, %v738
      %v1267 = vpop.permute.xlu0 %1266
      %1269 = vset.pattern.permute.xlu0 2
      %1270 = vperm.xlu0 %1269, %v740
      %v1271 = vpop.permute.xlu0 %1270
      %1273 = vset.pattern.permute.xlu0 2
      %1274 = vperm.xlu0 %1273, %v742
      %v1275 = vpop.permute.xlu0 %1274
      %1277 = vset.pattern.permute.xlu0 2
      %1278 = vperm.xlu0 %1277, %v744
      %v1279 = vpop.permute.xlu0 %1278
      %1281 = vset.pattern.permute.xlu0 2
      %1282 = vperm.xlu0 %1281, %v746
      %v1283 = vpop.permute.xlu0 %1282
      %1285 = vset.pattern.permute.xlu0 2
      %1286 = vperm.xlu0 %1285, %v748
      %v1287 = vpop.permute.xlu0 %1286
      %1289 = vset.pattern.permute.xlu0 2
      %1290 = vperm.xlu0 %1289, %v750
      %v1291 = vpop.permute.xlu0 %1290
      %1293 = vset.pattern.permute.xlu0 2
      %1294 = vperm.xlu0 %1293, %v752
      %v1295 = vpop.permute.xlu0 %1294
      %1297 = vset.pattern.permute.xlu0 2
      %1298 = vperm.xlu0 %1297, %v754
      %v1299 = vpop.permute.xlu0 %1298
      %1301 = vset.pattern.permute.xlu0 2
      %1302 = vperm.xlu0 %1301, %v756
      %v1303 = vpop.permute.xlu0 %1302
      %1305 = vset.pattern.permute.xlu0 2
      %1306 = vperm.xlu0 %1305, %v758
      %v1307 = vpop.permute.xlu0 %1306
      %1309 = vset.pattern.permute.xlu0 2
      %1310 = vperm.xlu0 %1309, %v760
      %v1311 = vpop.permute.xlu0 %1310
      %1313 = vset.pattern.permute.xlu0 2
      %1314 = vperm.xlu0 %1313, %v762
      %v1315 = vpop.permute.xlu0 %1314
      %1317 = vset.pattern.permute.xlu0 2
      %1318 = vperm.xlu0 %1317, %v764
      %v1319 = vpop.permute.xlu0 %1318
      %v1321 = vlaneseq
      %v1322 = vshrl.u32 %v1321, 7
      %v1323 = vsub.s32 2, %v1322
      %v1324 = vrot.slane %v209, %v1323
      %v1325 = vmul.f32 %v1195, %v1324
      %v1326 = vmul.f32 %v1199, %v1324
      %v1327 = vmul.f32 %v1203, %v1324
      %v1328 = vmul.f32 %v1207, %v1324
      %v1329 = vmul.f32 %v1211, %v1324
      %v1330 = vmul.f32 %v1215, %v1324
      %v1331 = vmul.f32 %v1219, %v1324
      %v1332 = vmul.f32 %v1223, %v1324
      %v1333 = vmul.f32 %v1227, %v1324
      %v1334 = vmul.f32 %v1231, %v1324
      %v1335 = vmul.f32 %v1235, %v1324
      %v1336 = vmul.f32 %v1239, %v1324
      %v1337 = vmul.f32 %v1243, %v1324
      %v1338 = vmul.f32 %v1247, %v1324
      %v1339 = vmul.f32 %v1251, %v1324
      %v1340 = vmul.f32 %v1255, %v1324
      %v1341 = vmul.f32 %v1259, %v1324
      %v1342 = vmul.f32 %v1263, %v1324
      %v1343 = vmul.f32 %v1267, %v1324
      %v1344 = vmul.f32 %v1271, %v1324
      %v1345 = vmul.f32 %v1275, %v1324
      %v1346 = vmul.f32 %v1279, %v1324
      %v1347 = vmul.f32 %v1283, %v1324
      %v1348 = vmul.f32 %v1287, %v1324
      %v1349 = vmul.f32 %v1291, %v1324
      %v1350 = vmul.f32 %v1295, %v1324
      %v1351 = vmul.f32 %v1299, %v1324
      %v1352 = vmul.f32 %v1303, %v1324
      %v1353 = vmul.f32 %v1307, %v1324
      %v1354 = vmul.f32 %v1311, %v1324
      %v1355 = vmul.f32 %v1315, %v1324
      %v1356 = vmul.f32 %v1319, %v1324
      %v1357 = vadd.f32 %v1161, %v1325
      %v1358 = vadd.f32 %v1162, %v1326
      %v1359 = vadd.f32 %v1163, %v1327
      %v1360 = vadd.f32 %v1164, %v1328
      %v1361 = vadd.f32 %v1165, %v1329
      %v1362 = vadd.f32 %v1166, %v1330
      %v1363 = vadd.f32 %v1167, %v1331
      %v1364 = vadd.f32 %v1168, %v1332
      %v1365 = vadd.f32 %v1169, %v1333
      %v1366 = vadd.f32 %v1170, %v1334
      %v1367 = vadd.f32 %v1171, %v1335
      %v1368 = vadd.f32 %v1172, %v1336
      %v1369 = vadd.f32 %v1173, %v1337
      %v1370 = vadd.f32 %v1174, %v1338
      %v1371 = vadd.f32 %v1175, %v1339
      %v1372 = vadd.f32 %v1176, %v1340
      %v1373 = vadd.f32 %v1177, %v1341
      %v1374 = vadd.f32 %v1178, %v1342
      %v1375 = vadd.f32 %v1179, %v1343
      %v1376 = vadd.f32 %v1180, %v1344
      %v1377 = vadd.f32 %v1181, %v1345
      %v1378 = vadd.f32 %v1182, %v1346
      %v1379 = vadd.f32 %v1183, %v1347
      %v1380 = vadd.f32 %v1184, %v1348
      %v1381 = vadd.f32 %v1185, %v1349
      %v1382 = vadd.f32 %v1186, %v1350
      %v1383 = vadd.f32 %v1187, %v1351
      %v1384 = vadd.f32 %v1188, %v1352
      %v1385 = vadd.f32 %v1189, %v1353
      %v1386 = vadd.f32 %v1190, %v1354
      %v1387 = vadd.f32 %v1191, %v1355
      %v1388 = vadd.f32 %v1192, %v1356
      %v1389 = vsub.f32 0.0, %v1357
      %v1390 = vsub.f32 0.0, %v1358
      %v1391 = vsub.f32 0.0, %v1359
      %v1392 = vsub.f32 0.0, %v1360
      %v1393 = vsub.f32 0.0, %v1361
      %v1394 = vsub.f32 0.0, %v1362
      %v1395 = vsub.f32 0.0, %v1363
      %v1396 = vsub.f32 0.0, %v1364
      %v1397 = vsub.f32 0.0, %v1365
      %v1398 = vsub.f32 0.0, %v1366
      %v1399 = vsub.f32 0.0, %v1367
      %v1400 = vsub.f32 0.0, %v1368
      %v1401 = vsub.f32 0.0, %v1369
      %v1402 = vsub.f32 0.0, %v1370
      %v1403 = vsub.f32 0.0, %v1371
      %v1404 = vsub.f32 0.0, %v1372
      %v1405 = vsub.f32 0.0, %v1373
      %v1406 = vsub.f32 0.0, %v1374
      %v1407 = vsub.f32 0.0, %v1375
      %v1408 = vsub.f32 0.0, %v1376
      %v1409 = vsub.f32 0.0, %v1377
      %v1410 = vsub.f32 0.0, %v1378
      %v1411 = vsub.f32 0.0, %v1379
      %v1412 = vsub.f32 0.0, %v1380
      %v1413 = vsub.f32 0.0, %v1381
      %v1414 = vsub.f32 0.0, %v1382
      %v1415 = vsub.f32 0.0, %v1383
      %v1416 = vsub.f32 0.0, %v1384
      %v1417 = vsub.f32 0.0, %v1385
      %v1418 = vsub.f32 0.0, %v1386
      %v1419 = vsub.f32 0.0, %v1387
      %v1420 = vsub.f32 0.0, %v1388
      %v1421 = vmul.f32 %v1389, 1.442695
      %v1422 = vpow.pop %v1421
      %v1423 = vmul.f32 %v1390, 1.442695
      %v1424 = vpow.pop %v1423
      %v1425 = vmul.f32 %v1391, 1.442695
      %v1426 = vpow.pop %v1425
      %v1427 = vmul.f32 %v1392, 1.442695
      %v1428 = vpow.pop %v1427
      %v1429 = vmul.f32 %v1393, 1.442695
      %v1430 = vpow.pop %v1429
      %v1431 = vmul.f32 %v1394, 1.442695
      %v1432 = vpow.pop %v1431
      %v1433 = vmul.f32 %v1395, 1.442695
      %v1434 = vpow.pop %v1433
      %v1435 = vmul.f32 %v1396, 1.442695
      %v1436 = vpow.pop %v1435
      %v1437 = vmul.f32 %v1397, 1.442695
      %v1438 = vpow.pop %v1437
      %v1439 = vmul.f32 %v1398, 1.442695
      %v1440 = vpow.pop %v1439
      %v1441 = vmul.f32 %v1399, 1.442695
      %v1442 = vpow.pop %v1441
      %v1443 = vmul.f32 %v1400, 1.442695
      %v1444 = vpow.pop %v1443
      %v1445 = vmul.f32 %v1401, 1.442695
      %v1446 = vpow.pop %v1445
      %v1447 = vmul.f32 %v1402, 1.442695
      %v1448 = vpow.pop %v1447
      %v1449 = vmul.f32 %v1403, 1.442695
      %v1450 = vpow.pop %v1449
      %v1451 = vmul.f32 %v1404, 1.442695
      %v1452 = vpow.pop %v1451
      %v1453 = vmul.f32 %v1405, 1.442695
      %v1454 = vpow.pop %v1453
      %v1455 = vmul.f32 %v1406, 1.442695
      %v1456 = vpow.pop %v1455
      %v1457 = vmul.f32 %v1407, 1.442695
      %v1458 = vpow.pop %v1457
      %v1459 = vmul.f32 %v1408, 1.442695
      %v1460 = vpow.pop %v1459
      %v1461 = vmul.f32 %v1409, 1.442695
      %v1462 = vpow.pop %v1461
      %v1463 = vmul.f32 %v1410, 1.442695
      %v1464 = vpow.pop %v1463
      %v1465 = vmul.f32 %v1411, 1.442695
      %v1466 = vpow.pop %v1465
      %v1467 = vmul.f32 %v1412, 1.442695
      %v1468 = vpow.pop %v1467
      %v1469 = vmul.f32 %v1413, 1.442695
      %v1470 = vpow.pop %v1469
      %v1471 = vmul.f32 %v1414, 1.442695
      %v1472 = vpow.pop %v1471
      %v1473 = vmul.f32 %v1415, 1.442695
      %v1474 = vpow.pop %v1473
      %v1475 = vmul.f32 %v1416, 1.442695
      %v1476 = vpow.pop %v1475
      %v1477 = vmul.f32 %v1417, 1.442695
      %v1478 = vpow.pop %v1477
      %v1479 = vmul.f32 %v1418, 1.442695
      %v1480 = vpow.pop %v1479
      %v1481 = vmul.f32 %v1419, 1.442695
      %v1482 = vpow.pop %v1481
      %v1483 = vmul.f32 %v1420, 1.442695
      %v1484 = vpow.pop %v1483
      %v1485 = vadd.f32 %v1422, 1.0
      %v1486 = vadd.f32 %v1424, 1.0
      %v1487 = vadd.f32 %v1426, 1.0
      %v1488 = vadd.f32 %v1428, 1.0
      %v1489 = vadd.f32 %v1430, 1.0
      %v1490 = vadd.f32 %v1432, 1.0
      %v1491 = vadd.f32 %v1434, 1.0
      %v1492 = vadd.f32 %v1436, 1.0
      %v1493 = vadd.f32 %v1438, 1.0
      %v1494 = vadd.f32 %v1440, 1.0
      %v1495 = vadd.f32 %v1442, 1.0
      %v1496 = vadd.f32 %v1444, 1.0
      %v1497 = vadd.f32 %v1446, 1.0
      %v1498 = vadd.f32 %v1448, 1.0
      %v1499 = vadd.f32 %v1450, 1.0
      %v1500 = vadd.f32 %v1452, 1.0
      %v1501 = vadd.f32 %v1454, 1.0
      %v1502 = vadd.f32 %v1456, 1.0
      %v1503 = vadd.f32 %v1458, 1.0
      %v1504 = vadd.f32 %v1460, 1.0
      %v1505 = vadd.f32 %v1462, 1.0
      %v1506 = vadd.f32 %v1464, 1.0
      %v1507 = vadd.f32 %v1466, 1.0
      %v1508 = vadd.f32 %v1468, 1.0
      %v1509 = vadd.f32 %v1470, 1.0
      %v1510 = vadd.f32 %v1472, 1.0
      %v1511 = vadd.f32 %v1474, 1.0
      %v1512 = vadd.f32 %v1476, 1.0
      %v1513 = vadd.f32 %v1478, 1.0
      %v1514 = vadd.f32 %v1480, 1.0
      %v1515 = vadd.f32 %v1482, 1.0
      %v1516 = vadd.f32 %v1484, 1.0
      %v1517 = vrcp.pop %v1485
      %v1518 = vmul.f32 1.0, %v1517
      %v1519 = vrcp.pop %v1486
      %v1520 = vmul.f32 1.0, %v1519
      %v1521 = vrcp.pop %v1487
      %v1522 = vmul.f32 1.0, %v1521
      %v1523 = vrcp.pop %v1488
      %v1524 = vmul.f32 1.0, %v1523
      %v1525 = vrcp.pop %v1489
      %v1526 = vmul.f32 1.0, %v1525
      %v1527 = vrcp.pop %v1490
      %v1528 = vmul.f32 1.0, %v1527
      %v1529 = vrcp.pop %v1491
      %v1530 = vmul.f32 1.0, %v1529
      %v1531 = vrcp.pop %v1492
      %v1532 = vmul.f32 1.0, %v1531
      %v1533 = vrcp.pop %v1493
      %v1534 = vmul.f32 1.0, %v1533
      %v1535 = vrcp.pop %v1494
      %v1536 = vmul.f32 1.0, %v1535
      %v1537 = vrcp.pop %v1495
      %v1538 = vmul.f32 1.0, %v1537
      %v1539 = vrcp.pop %v1496
      %v1540 = vmul.f32 1.0, %v1539
      %v1541 = vrcp.pop %v1497
      %v1542 = vmul.f32 1.0, %v1541
      %v1543 = vrcp.pop %v1498
      %v1544 = vmul.f32 1.0, %v1543
      %v1545 = vrcp.pop %v1499
      %v1546 = vmul.f32 1.0, %v1545
      %v1547 = vrcp.pop %v1500
      %v1548 = vmul.f32 1.0, %v1547
      %v1549 = vrcp.pop %v1501
      %v1550 = vmul.f32 1.0, %v1549
      %v1551 = vrcp.pop %v1502
      %v1552 = vmul.f32 1.0, %v1551
      %v1553 = vrcp.pop %v1503
      %v1554 = vmul.f32 1.0, %v1553
      %v1555 = vrcp.pop %v1504
      %v1556 = vmul.f32 1.0, %v1555
      %v1557 = vrcp.pop %v1505
      %v1558 = vmul.f32 1.0, %v1557
      %v1559 = vrcp.pop %v1506
      %v1560 = vmul.f32 1.0, %v1559
      %v1561 = vrcp.pop %v1507
      %v1562 = vmul.f32 1.0, %v1561
      %v1563 = vrcp.pop %v1508
      %v1564 = vmul.f32 1.0, %v1563
      %v1565 = vrcp.pop %v1509
      %v1566 = vmul.f32 1.0, %v1565
      %v1567 = vrcp.pop %v1510
      %v1568 = vmul.f32 1.0, %v1567
      %v1569 = vrcp.pop %v1511
      %v1570 = vmul.f32 1.0, %v1569
      %v1571 = vrcp.pop %v1512
      %v1572 = vmul.f32 1.0, %v1571
      %v1573 = vrcp.pop %v1513
      %v1574 = vmul.f32 1.0, %v1573
      %v1575 = vrcp.pop %v1514
      %v1576 = vmul.f32 1.0, %v1575
      %v1577 = vrcp.pop %v1515
      %v1578 = vmul.f32 1.0, %v1577
      %v1579 = vrcp.pop %v1516
      %v1580 = vmul.f32 1.0, %v1579
      %1582 = vset.pattern.permute.xlu0 0
      %1583 = vperm.xlu0 %1582, %v1518
      %v1584 = vpop.permute.xlu0 %1583
      %1587 = vset.pattern.permute.xlu0 0
      %1588 = vperm.xlu0 %1587, %v1520
      %v1589 = vpop.permute.xlu0 %1588
      %1592 = vset.pattern.permute.xlu0 0
      %1593 = vperm.xlu0 %1592, %v1522
      %v1594 = vpop.permute.xlu0 %1593
      %1597 = vset.pattern.permute.xlu0 0
      %1598 = vperm.xlu0 %1597, %v1524
      %v1599 = vpop.permute.xlu0 %1598
      %1602 = vset.pattern.permute.xlu0 0
      %1603 = vperm.xlu0 %1602, %v1526
      %v1604 = vpop.permute.xlu0 %1603
      %1607 = vset.pattern.permute.xlu0 0
      %1608 = vperm.xlu0 %1607, %v1528
      %v1609 = vpop.permute.xlu0 %1608
      %1612 = vset.pattern.permute.xlu0 0
      %1613 = vperm.xlu0 %1612, %v1530
      %v1614 = vpop.permute.xlu0 %1613
      %1617 = vset.pattern.permute.xlu0 0
      %1618 = vperm.xlu0 %1617, %v1532
      %v1619 = vpop.permute.xlu0 %1618
      %1622 = vset.pattern.permute.xlu0 0
      %1623 = vperm.xlu0 %1622, %v1534
      %v1624 = vpop.permute.xlu0 %1623
      %1627 = vset.pattern.permute.xlu0 0
      %1628 = vperm.xlu0 %1627, %v1536
      %v1629 = vpop.permute.xlu0 %1628
      %1632 = vset.pattern.permute.xlu0 0
      %1633 = vperm.xlu0 %1632, %v1538
      %v1634 = vpop.permute.xlu0 %1633
      %1637 = vset.pattern.permute.xlu0 0
      %1638 = vperm.xlu0 %1637, %v1540
      %v1639 = vpop.permute.xlu0 %1638
      %1642 = vset.pattern.permute.xlu0 0
      %1643 = vperm.xlu0 %1642, %v1542
      %v1644 = vpop.permute.xlu0 %1643
      %1647 = vset.pattern.permute.xlu0 0
      %1648 = vperm.xlu0 %1647, %v1544
      %v1649 = vpop.permute.xlu0 %1648
      %1652 = vset.pattern.permute.xlu0 0
      %1653 = vperm.xlu0 %1652, %v1546
      %v1654 = vpop.permute.xlu0 %1653
      %1657 = vset.pattern.permute.xlu0 0
      %1658 = vperm.xlu0 %1657, %v1548
      %v1659 = vpop.permute.xlu0 %1658
      %1662 = vset.pattern.permute.xlu0 0
      %1663 = vperm.xlu0 %1662, %v1550
      %v1664 = vpop.permute.xlu0 %1663
      %1667 = vset.pattern.permute.xlu0 0
      %1668 = vperm.xlu0 %1667, %v1552
      %v1669 = vpop.permute.xlu0 %1668
      %1672 = vset.pattern.permute.xlu0 0
      %1673 = vperm.xlu0 %1672, %v1554
      %v1674 = vpop.permute.xlu0 %1673
      %1677 = vset.pattern.permute.xlu0 0
      %1678 = vperm.xlu0 %1677, %v1556
      %v1679 = vpop.permute.xlu0 %1678
      %1682 = vset.pattern.permute.xlu0 0
      %1683 = vperm.xlu0 %1682, %v1558
      %v1684 = vpop.permute.xlu0 %1683
      %1687 = vset.pattern.permute.xlu0 0
      %1688 = vperm.xlu0 %1687, %v1560
      %v1689 = vpop.permute.xlu0 %1688
      %1692 = vset.pattern.permute.xlu0 0
      %1693 = vperm.xlu0 %1692, %v1562
      %v1694 = vpop.permute.xlu0 %1693
      %1697 = vset.pattern.permute.xlu0 0
      %1698 = vperm.xlu0 %1697, %v1564
      %v1699 = vpop.permute.xlu0 %1698
      %1702 = vset.pattern.permute.xlu0 0
      %1703 = vperm.xlu0 %1702, %v1566
      %v1704 = vpop.permute.xlu0 %1703
      %1707 = vset.pattern.permute.xlu0 0
      %1708 = vperm.xlu0 %1707, %v1568
      %v1709 = vpop.permute.xlu0 %1708
      %1712 = vset.pattern.permute.xlu0 0
      %1713 = vperm.xlu0 %1712, %v1570
      %v1714 = vpop.permute.xlu0 %1713
      %1717 = vset.pattern.permute.xlu0 0
      %1718 = vperm.xlu0 %1717, %v1572
      %v1719 = vpop.permute.xlu0 %1718
      %1722 = vset.pattern.permute.xlu0 0
      %1723 = vperm.xlu0 %1722, %v1574
      %v1724 = vpop.permute.xlu0 %1723
      %1727 = vset.pattern.permute.xlu0 0
      %1728 = vperm.xlu0 %1727, %v1576
      %v1729 = vpop.permute.xlu0 %1728
      %1732 = vset.pattern.permute.xlu0 0
      %1733 = vperm.xlu0 %1732, %v1578
      %v1734 = vpop.permute.xlu0 %1733
      %1737 = vset.pattern.permute.xlu0 0
      %1738 = vperm.xlu0 %1737, %v1580
      %v1739 = vpop.permute.xlu0 %1738
      %v1741 = vlaneseq
      %v1742 = vshrl.u32 %v1741, 7
      %v1743 = vsub.s32 0, %v1742
      %v1744 = vrot.slane %v210, %v1743
      %v1745 = vmul.f32 %v1584, %v1744
      %v1746 = vmul.f32 %v1589, %v1744
      %v1747 = vmul.f32 %v1594, %v1744
      %v1748 = vmul.f32 %v1599, %v1744
      %v1749 = vmul.f32 %v1604, %v1744
      %v1750 = vmul.f32 %v1609, %v1744
      %v1751 = vmul.f32 %v1614, %v1744
      %v1752 = vmul.f32 %v1619, %v1744
      %v1753 = vmul.f32 %v1624, %v1744
      %v1754 = vmul.f32 %v1629, %v1744
      %v1755 = vmul.f32 %v1634, %v1744
      %v1756 = vmul.f32 %v1639, %v1744
      %v1757 = vmul.f32 %v1644, %v1744
      %v1758 = vmul.f32 %v1649, %v1744
      %v1759 = vmul.f32 %v1654, %v1744
      %v1760 = vmul.f32 %v1659, %v1744
      %v1761 = vmul.f32 %v1664, %v1744
      %v1762 = vmul.f32 %v1669, %v1744
      %v1763 = vmul.f32 %v1674, %v1744
      %v1764 = vmul.f32 %v1679, %v1744
      %v1765 = vmul.f32 %v1684, %v1744
      %v1766 = vmul.f32 %v1689, %v1744
      %v1767 = vmul.f32 %v1694, %v1744
      %v1768 = vmul.f32 %v1699, %v1744
      %v1769 = vmul.f32 %v1704, %v1744
      %v1770 = vmul.f32 %v1709, %v1744
      %v1771 = vmul.f32 %v1714, %v1744
      %v1772 = vmul.f32 %v1719, %v1744
      %v1773 = vmul.f32 %v1724, %v1744
      %v1774 = vmul.f32 %v1729, %v1744
      %v1775 = vmul.f32 %v1734, %v1744
      %v1776 = vmul.f32 %v1739, %v1744
      %v1777 = vlaneseq
      %v1778 = vshrl.u32 %v1777, 7
      %v1779 = vsub.s32 0, %v1778
      %v1780 = vrot.slane %v208, %v1779
      %v1781 = vadd.f32 %v1780, %v1745
      %v1782 = vadd.f32 %v1780, %v1746
      %v1783 = vadd.f32 %v1780, %v1747
      %v1784 = vadd.f32 %v1780, %v1748
      %v1785 = vadd.f32 %v1780, %v1749
      %v1786 = vadd.f32 %v1780, %v1750
      %v1787 = vadd.f32 %v1780, %v1751
      %v1788 = vadd.f32 %v1780, %v1752
      %v1789 = vadd.f32 %v1780, %v1753
      %v1790 = vadd.f32 %v1780, %v1754
      %v1791 = vadd.f32 %v1780, %v1755
      %v1792 = vadd.f32 %v1780, %v1756
      %v1793 = vadd.f32 %v1780, %v1757
      %v1794 = vadd.f32 %v1780, %v1758
      %v1795 = vadd.f32 %v1780, %v1759
      %v1796 = vadd.f32 %v1780, %v1760
      %v1797 = vadd.f32 %v1780, %v1761
      %v1798 = vadd.f32 %v1780, %v1762
      %v1799 = vadd.f32 %v1780, %v1763
      %v1800 = vadd.f32 %v1780, %v1764
      %v1801 = vadd.f32 %v1780, %v1765
      %v1802 = vadd.f32 %v1780, %v1766
      %v1803 = vadd.f32 %v1780, %v1767
      %v1804 = vadd.f32 %v1780, %v1768
      %v1805 = vadd.f32 %v1780, %v1769
      %v1806 = vadd.f32 %v1780, %v1770
      %v1807 = vadd.f32 %v1780, %v1771
      %v1808 = vadd.f32 %v1780, %v1772
      %v1809 = vadd.f32 %v1780, %v1773
      %v1810 = vadd.f32 %v1780, %v1774
      %v1811 = vadd.f32 %v1780, %v1775
      %v1812 = vadd.f32 %v1780, %v1776
      %1813 = vset.pattern.permute.xlu0 1
      %1814 = vperm.xlu0 %1813, %v1518
      %v1815 = vpop.permute.xlu0 %1814
      %1817 = vset.pattern.permute.xlu0 1
      %1818 = vperm.xlu0 %1817, %v1520
      %v1819 = vpop.permute.xlu0 %1818
      %1821 = vset.pattern.permute.xlu0 1
      %1822 = vperm.xlu0 %1821, %v1522
      %v1823 = vpop.permute.xlu0 %1822
      %1825 = vset.pattern.permute.xlu0 1
      %1826 = vperm.xlu0 %1825, %v1524
      %v1827 = vpop.permute.xlu0 %1826
      %1829 = vset.pattern.permute.xlu0 1
      %1830 = vperm.xlu0 %1829, %v1526
      %v1831 = vpop.permute.xlu0 %1830
      %1833 = vset.pattern.permute.xlu0 1
      %1834 = vperm.xlu0 %1833, %v1528
      %v1835 = vpop.permute.xlu0 %1834
      %1837 = vset.pattern.permute.xlu0 1
      %1838 = vperm.xlu0 %1837, %v1530
      %v1839 = vpop.permute.xlu0 %1838
      %1841 = vset.pattern.permute.xlu0 1
      %1842 = vperm.xlu0 %1841, %v1532
      %v1843 = vpop.permute.xlu0 %1842
      %1845 = vset.pattern.permute.xlu0 1
      %1846 = vperm.xlu0 %1845, %v1534
      %v1847 = vpop.permute.xlu0 %1846
      %1849 = vset.pattern.permute.xlu0 1
      %1850 = vperm.xlu0 %1849, %v1536
      %v1851 = vpop.permute.xlu0 %1850
      %1853 = vset.pattern.permute.xlu0 1
      %1854 = vperm.xlu0 %1853, %v1538
      %v1855 = vpop.permute.xlu0 %1854
      %1857 = vset.pattern.permute.xlu0 1
      %1858 = vperm.xlu0 %1857, %v1540
      %v1859 = vpop.permute.xlu0 %1858
      %1861 = vset.pattern.permute.xlu0 1
      %1862 = vperm.xlu0 %1861, %v1542
      %v1863 = vpop.permute.xlu0 %1862
      %1865 = vset.pattern.permute.xlu0 1
      %1866 = vperm.xlu0 %1865, %v1544
      %v1867 = vpop.permute.xlu0 %1866
      %1869 = vset.pattern.permute.xlu0 1
      %1870 = vperm.xlu0 %1869, %v1546
      %v1871 = vpop.permute.xlu0 %1870
      %1873 = vset.pattern.permute.xlu0 1
      %1874 = vperm.xlu0 %1873, %v1548
      %v1875 = vpop.permute.xlu0 %1874
      %1877 = vset.pattern.permute.xlu0 1
      %1878 = vperm.xlu0 %1877, %v1550
      %v1879 = vpop.permute.xlu0 %1878
      %1881 = vset.pattern.permute.xlu0 1
      %1882 = vperm.xlu0 %1881, %v1552
      %v1883 = vpop.permute.xlu0 %1882
      %1885 = vset.pattern.permute.xlu0 1
      %1886 = vperm.xlu0 %1885, %v1554
      %v1887 = vpop.permute.xlu0 %1886
      %1889 = vset.pattern.permute.xlu0 1
      %1890 = vperm.xlu0 %1889, %v1556
      %v1891 = vpop.permute.xlu0 %1890
      %1893 = vset.pattern.permute.xlu0 1
      %1894 = vperm.xlu0 %1893, %v1558
      %v1895 = vpop.permute.xlu0 %1894
      %1897 = vset.pattern.permute.xlu0 1
      %1898 = vperm.xlu0 %1897, %v1560
      %v1899 = vpop.permute.xlu0 %1898
      %1901 = vset.pattern.permute.xlu0 1
      %1902 = vperm.xlu0 %1901, %v1562
      %v1903 = vpop.permute.xlu0 %1902
      %1905 = vset.pattern.permute.xlu0 1
      %1906 = vperm.xlu0 %1905, %v1564
      %v1907 = vpop.permute.xlu0 %1906
      %1909 = vset.pattern.permute.xlu0 1
      %1910 = vperm.xlu0 %1909, %v1566
      %v1911 = vpop.permute.xlu0 %1910
      %1913 = vset.pattern.permute.xlu0 1
      %1914 = vperm.xlu0 %1913, %v1568
      %v1915 = vpop.permute.xlu0 %1914
      %1917 = vset.pattern.permute.xlu0 1
      %1918 = vperm.xlu0 %1917, %v1570
      %v1919 = vpop.permute.xlu0 %1918
      %1921 = vset.pattern.permute.xlu0 1
      %1922 = vperm.xlu0 %1921, %v1572
      %v1923 = vpop.permute.xlu0 %1922
      %1925 = vset.pattern.permute.xlu0 1
      %1926 = vperm.xlu0 %1925, %v1574
      %v1927 = vpop.permute.xlu0 %1926
      %1929 = vset.pattern.permute.xlu0 1
      %1930 = vperm.xlu0 %1929, %v1576
      %v1931 = vpop.permute.xlu0 %1930
      %1933 = vset.pattern.permute.xlu0 1
      %1934 = vperm.xlu0 %1933, %v1578
      %v1935 = vpop.permute.xlu0 %1934
      %1937 = vset.pattern.permute.xlu0 1
      %1938 = vperm.xlu0 %1937, %v1580
      %v1939 = vpop.permute.xlu0 %1938
      %v1941 = vlaneseq
      %v1942 = vshrl.u32 %v1941, 7
      %v1943 = vsub.s32 1, %v1942
      %v1944 = vrot.slane %v210, %v1943
      %v1945 = vmul.f32 %v1815, %v1944
      %v1946 = vmul.f32 %v1819, %v1944
      %v1947 = vmul.f32 %v1823, %v1944
      %v1948 = vmul.f32 %v1827, %v1944
      %v1949 = vmul.f32 %v1831, %v1944
      %v1950 = vmul.f32 %v1835, %v1944
      %v1951 = vmul.f32 %v1839, %v1944
      %v1952 = vmul.f32 %v1843, %v1944
      %v1953 = vmul.f32 %v1847, %v1944
      %v1954 = vmul.f32 %v1851, %v1944
      %v1955 = vmul.f32 %v1855, %v1944
      %v1956 = vmul.f32 %v1859, %v1944
      %v1957 = vmul.f32 %v1863, %v1944
      %v1958 = vmul.f32 %v1867, %v1944
      %v1959 = vmul.f32 %v1871, %v1944
      %v1960 = vmul.f32 %v1875, %v1944
      %v1961 = vmul.f32 %v1879, %v1944
      %v1962 = vmul.f32 %v1883, %v1944
      %v1963 = vmul.f32 %v1887, %v1944
      %v1964 = vmul.f32 %v1891, %v1944
      %v1965 = vmul.f32 %v1895, %v1944
      %v1966 = vmul.f32 %v1899, %v1944
      %v1967 = vmul.f32 %v1903, %v1944
      %v1968 = vmul.f32 %v1907, %v1944
      %v1969 = vmul.f32 %v1911, %v1944
      %v1970 = vmul.f32 %v1915, %v1944
      %v1971 = vmul.f32 %v1919, %v1944
      %v1972 = vmul.f32 %v1923, %v1944
      %v1973 = vmul.f32 %v1927, %v1944
      %v1974 = vmul.f32 %v1931, %v1944
      %v1975 = vmul.f32 %v1935, %v1944
      %v1976 = vmul.f32 %v1939, %v1944
      %v1977 = vadd.f32 %v1781, %v1945
      %v1978 = vadd.f32 %v1782, %v1946
      %v1979 = vadd.f32 %v1783, %v1947
      %v1980 = vadd.f32 %v1784, %v1948
      %v1981 = vadd.f32 %v1785, %v1949
      %v1982 = vadd.f32 %v1786, %v1950
      %v1983 = vadd.f32 %v1787, %v1951
      %v1984 = vadd.f32 %v1788, %v1952
      %v1985 = vadd.f32 %v1789, %v1953
      %v1986 = vadd.f32 %v1790, %v1954
      %v1987 = vadd.f32 %v1791, %v1955
      %v1988 = vadd.f32 %v1792, %v1956
      %v1989 = vadd.f32 %v1793, %v1957
      %v1990 = vadd.f32 %v1794, %v1958
      %v1991 = vadd.f32 %v1795, %v1959
      %v1992 = vadd.f32 %v1796, %v1960
      %v1993 = vadd.f32 %v1797, %v1961
      %v1994 = vadd.f32 %v1798, %v1962
      %v1995 = vadd.f32 %v1799, %v1963
      %v1996 = vadd.f32 %v1800, %v1964
      %v1997 = vadd.f32 %v1801, %v1965
      %v1998 = vadd.f32 %v1802, %v1966
      %v1999 = vadd.f32 %v1803, %v1967
      %v2000 = vadd.f32 %v1804, %v1968
      %v2001 = vadd.f32 %v1805, %v1969
      %v2002 = vadd.f32 %v1806, %v1970
      %v2003 = vadd.f32 %v1807, %v1971
      %v2004 = vadd.f32 %v1808, %v1972
      %v2005 = vadd.f32 %v1809, %v1973
      %v2006 = vadd.f32 %v1810, %v1974
      %v2007 = vadd.f32 %v1811, %v1975
      %v2008 = vadd.f32 %v1812, %v1976
      %2009 = vset.pattern.permute.xlu0 2
      %2010 = vperm.xlu0 %2009, %v1518
      %v2011 = vpop.permute.xlu0 %2010
      %2013 = vset.pattern.permute.xlu0 2
      %2014 = vperm.xlu0 %2013, %v1520
      %v2015 = vpop.permute.xlu0 %2014
      %2017 = vset.pattern.permute.xlu0 2
      %2018 = vperm.xlu0 %2017, %v1522
      %v2019 = vpop.permute.xlu0 %2018
      %2021 = vset.pattern.permute.xlu0 2
      %2022 = vperm.xlu0 %2021, %v1524
      %v2023 = vpop.permute.xlu0 %2022
      %2025 = vset.pattern.permute.xlu0 2
      %2026 = vperm.xlu0 %2025, %v1526
      %v2027 = vpop.permute.xlu0 %2026
      %2029 = vset.pattern.permute.xlu0 2
      %2030 = vperm.xlu0 %2029, %v1528
      %v2031 = vpop.permute.xlu0 %2030
      %2033 = vset.pattern.permute.xlu0 2
      %2034 = vperm.xlu0 %2033, %v1530
      %v2035 = vpop.permute.xlu0 %2034
      %2037 = vset.pattern.permute.xlu0 2
      %2038 = vperm.xlu0 %2037, %v1532
      %v2039 = vpop.permute.xlu0 %2038
      %2041 = vset.pattern.permute.xlu0 2
      %2042 = vperm.xlu0 %2041, %v1534
      %v2043 = vpop.permute.xlu0 %2042
      %2045 = vset.pattern.permute.xlu0 2
      %2046 = vperm.xlu0 %2045, %v1536
      %v2047 = vpop.permute.xlu0 %2046
      %2049 = vset.pattern.permute.xlu0 2
      %2050 = vperm.xlu0 %2049, %v1538
      %v2051 = vpop.permute.xlu0 %2050
      %2053 = vset.pattern.permute.xlu0 2
      %2054 = vperm.xlu0 %2053, %v1540
      %v2055 = vpop.permute.xlu0 %2054
      %2057 = vset.pattern.permute.xlu0 2
      %2058 = vperm.xlu0 %2057, %v1542
      %v2059 = vpop.permute.xlu0 %2058
      %2061 = vset.pattern.permute.xlu0 2
      %2062 = vperm.xlu0 %2061, %v1544
      %v2063 = vpop.permute.xlu0 %2062
      %2065 = vset.pattern.permute.xlu0 2
      %2066 = vperm.xlu0 %2065, %v1546
      %v2067 = vpop.permute.xlu0 %2066
      %2069 = vset.pattern.permute.xlu0 2
      %2070 = vperm.xlu0 %2069, %v1548
      %v2071 = vpop.permute.xlu0 %2070
      %2073 = vset.pattern.permute.xlu0 2
      %2074 = vperm.xlu0 %2073, %v1550
      %v2075 = vpop.permute.xlu0 %2074
      %2077 = vset.pattern.permute.xlu0 2
      %2078 = vperm.xlu0 %2077, %v1552
      %v2079 = vpop.permute.xlu0 %2078
      %2081 = vset.pattern.permute.xlu0 2
      %2082 = vperm.xlu0 %2081, %v1554
      %v2083 = vpop.permute.xlu0 %2082
      %2085 = vset.pattern.permute.xlu0 2
      %2086 = vperm.xlu0 %2085, %v1556
      %v2087 = vpop.permute.xlu0 %2086
      %2089 = vset.pattern.permute.xlu0 2
      %2090 = vperm.xlu0 %2089, %v1558
      %v2091 = vpop.permute.xlu0 %2090
      %2093 = vset.pattern.permute.xlu0 2
      %2094 = vperm.xlu0 %2093, %v1560
      %v2095 = vpop.permute.xlu0 %2094
      %2097 = vset.pattern.permute.xlu0 2
      %2098 = vperm.xlu0 %2097, %v1562
      %v2099 = vpop.permute.xlu0 %2098
      %2101 = vset.pattern.permute.xlu0 2
      %2102 = vperm.xlu0 %2101, %v1564
      %v2103 = vpop.permute.xlu0 %2102
      %2105 = vset.pattern.permute.xlu0 2
      %2106 = vperm.xlu0 %2105, %v1566
      %v2107 = vpop.permute.xlu0 %2106
      %2109 = vset.pattern.permute.xlu0 2
      %2110 = vperm.xlu0 %2109, %v1568
      %v2111 = vpop.permute.xlu0 %2110
      %2113 = vset.pattern.permute.xlu0 2
      %2114 = vperm.xlu0 %2113, %v1570
      %v2115 = vpop.permute.xlu0 %2114
      %2117 = vset.pattern.permute.xlu0 2
      %2118 = vperm.xlu0 %2117, %v1572
      %v2119 = vpop.permute.xlu0 %2118
      %2121 = vset.pattern.permute.xlu0 2
      %2122 = vperm.xlu0 %2121, %v1574
      %v2123 = vpop.permute.xlu0 %2122
      %2125 = vset.pattern.permute.xlu0 2
      %2126 = vperm.xlu0 %2125, %v1576
      %v2127 = vpop.permute.xlu0 %2126
      %2129 = vset.pattern.permute.xlu0 2
      %2130 = vperm.xlu0 %2129, %v1578
      %v2131 = vpop.permute.xlu0 %2130
      %2133 = vset.pattern.permute.xlu0 2
      %2134 = vperm.xlu0 %2133, %v1580
      %v2135 = vpop.permute.xlu0 %2134
      %v2137 = vlaneseq
      %v2138 = vshrl.u32 %v2137, 7
      %v2139 = vsub.s32 2, %v2138
      %v2140 = vrot.slane %v210, %v2139
      %v2141 = vmul.f32 %v2011, %v2140
      %v2142 = vmul.f32 %v2015, %v2140
      %v2143 = vmul.f32 %v2019, %v2140
      %v2144 = vmul.f32 %v2023, %v2140
      %v2145 = vmul.f32 %v2027, %v2140
      %v2146 = vmul.f32 %v2031, %v2140
      %v2147 = vmul.f32 %v2035, %v2140
      %v2148 = vmul.f32 %v2039, %v2140
      %v2149 = vmul.f32 %v2043, %v2140
      %v2150 = vmul.f32 %v2047, %v2140
      %v2151 = vmul.f32 %v2051, %v2140
      %v2152 = vmul.f32 %v2055, %v2140
      %v2153 = vmul.f32 %v2059, %v2140
      %v2154 = vmul.f32 %v2063, %v2140
      %v2155 = vmul.f32 %v2067, %v2140
      %v2156 = vmul.f32 %v2071, %v2140
      %v2157 = vmul.f32 %v2075, %v2140
      %v2158 = vmul.f32 %v2079, %v2140
      %v2159 = vmul.f32 %v2083, %v2140
      %v2160 = vmul.f32 %v2087, %v2140
      %v2161 = vmul.f32 %v2091, %v2140
      %v2162 = vmul.f32 %v2095, %v2140
      %v2163 = vmul.f32 %v2099, %v2140
      %v2164 = vmul.f32 %v2103, %v2140
      %v2165 = vmul.f32 %v2107, %v2140
      %v2166 = vmul.f32 %v2111, %v2140
      %v2167 = vmul.f32 %v2115, %v2140
      %v2168 = vmul.f32 %v2119, %v2140
      %v2169 = vmul.f32 %v2123, %v2140
      %v2170 = vmul.f32 %v2127, %v2140
      %v2171 = vmul.f32 %v2131, %v2140
      %v2172 = vmul.f32 %v2135, %v2140
      %v2173 = vadd.f32 %v1977, %v2141
      %v2174 = vadd.f32 %v1978, %v2142
      %v2175 = vadd.f32 %v1979, %v2143
      %v2176 = vadd.f32 %v1980, %v2144
      %v2177 = vadd.f32 %v1981, %v2145
      %v2178 = vadd.f32 %v1982, %v2146
      %v2179 = vadd.f32 %v1983, %v2147
      %v2180 = vadd.f32 %v1984, %v2148
      %v2181 = vadd.f32 %v1985, %v2149
      %v2182 = vadd.f32 %v1986, %v2150
      %v2183 = vadd.f32 %v1987, %v2151
      %v2184 = vadd.f32 %v1988, %v2152
      %v2185 = vadd.f32 %v1989, %v2153
      %v2186 = vadd.f32 %v1990, %v2154
      %v2187 = vadd.f32 %v1991, %v2155
      %v2188 = vadd.f32 %v1992, %v2156
      %v2189 = vadd.f32 %v1993, %v2157
      %v2190 = vadd.f32 %v1994, %v2158
      %v2191 = vadd.f32 %v1995, %v2159
      %v2192 = vadd.f32 %v1996, %v2160
      %v2193 = vadd.f32 %v1997, %v2161
      %v2194 = vadd.f32 %v1998, %v2162
      %v2195 = vadd.f32 %v1999, %v2163
      %v2196 = vadd.f32 %v2000, %v2164
      %v2197 = vadd.f32 %v2001, %v2165
      %v2198 = vadd.f32 %v2002, %v2166
      %v2199 = vadd.f32 %v2003, %v2167
      %v2200 = vadd.f32 %v2004, %v2168
      %v2201 = vadd.f32 %v2005, %v2169
      %v2202 = vadd.f32 %v2006, %v2170
      %v2203 = vadd.f32 %v2007, %v2171
      %v2204 = vadd.f32 %v2008, %v2172
      %v2205 = vsub.f32 0.0, %v2173
      %v2206 = vsub.f32 0.0, %v2174
      %v2207 = vsub.f32 0.0, %v2175
      %v2208 = vsub.f32 0.0, %v2176
      %v2209 = vsub.f32 0.0, %v2177
      %v2210 = vsub.f32 0.0, %v2178
      %v2211 = vsub.f32 0.0, %v2179
      %v2212 = vsub.f32 0.0, %v2180
      %v2213 = vsub.f32 0.0, %v2181
      %v2214 = vsub.f32 0.0, %v2182
      %v2215 = vsub.f32 0.0, %v2183
      %v2216 = vsub.f32 0.0, %v2184
      %v2217 = vsub.f32 0.0, %v2185
      %v2218 = vsub.f32 0.0, %v2186
      %v2219 = vsub.f32 0.0, %v2187
      %v2220 = vsub.f32 0.0, %v2188
      %v2221 = vsub.f32 0.0, %v2189
      %v2222 = vsub.f32 0.0, %v2190
      %v2223 = vsub.f32 0.0, %v2191
      %v2224 = vsub.f32 0.0, %v2192
      %v2225 = vsub.f32 0.0, %v2193
      %v2226 = vsub.f32 0.0, %v2194
      %v2227 = vsub.f32 0.0, %v2195
      %v2228 = vsub.f32 0.0, %v2196
      %v2229 = vsub.f32 0.0, %v2197
      %v2230 = vsub.f32 0.0, %v2198
      %v2231 = vsub.f32 0.0, %v2199
      %v2232 = vsub.f32 0.0, %v2200
      %v2233 = vsub.f32 0.0, %v2201
      %v2234 = vsub.f32 0.0, %v2202
      %v2235 = vsub.f32 0.0, %v2203
      %v2236 = vsub.f32 0.0, %v2204
      %v2237 = vmul.f32 %v2205, 1.442695
      %v2238 = vpow.pop %v2237
      %v2239 = vmul.f32 %v2206, 1.442695
      %v2240 = vpow.pop %v2239
      %v2241 = vmul.f32 %v2207, 1.442695
      %v2242 = vpow.pop %v2241
      %v2243 = vmul.f32 %v2208, 1.442695
      %v2244 = vpow.pop %v2243
      %v2245 = vmul.f32 %v2209, 1.442695
      %v2246 = vpow.pop %v2245
      %v2247 = vmul.f32 %v2210, 1.442695
      %v2248 = vpow.pop %v2247
      %v2249 = vmul.f32 %v2211, 1.442695
      %v2250 = vpow.pop %v2249
      %v2251 = vmul.f32 %v2212, 1.442695
      %v2252 = vpow.pop %v2251
      %v2253 = vmul.f32 %v2213, 1.442695
      %v2254 = vpow.pop %v2253
      %v2255 = vmul.f32 %v2214, 1.442695
      %v2256 = vpow.pop %v2255
      %v2257 = vmul.f32 %v2215, 1.442695
      %v2258 = vpow.pop %v2257
      %v2259 = vmul.f32 %v2216, 1.442695
      %v2260 = vpow.pop %v2259
      %v2261 = vmul.f32 %v2217, 1.442695
      %v2262 = vpow.pop %v2261
      %v2263 = vmul.f32 %v2218, 1.442695
      %v2264 = vpow.pop %v2263
      %v2265 = vmul.f32 %v2219, 1.442695
      %v2266 = vpow.pop %v2265
      %v2267 = vmul.f32 %v2220, 1.442695
      %v2268 = vpow.pop %v2267
      %v2269 = vmul.f32 %v2221, 1.442695
      %v2270 = vpow.pop %v2269
      %v2271 = vmul.f32 %v2222, 1.442695
      %v2272 = vpow.pop %v2271
      %v2273 = vmul.f32 %v2223, 1.442695
      %v2274 = vpow.pop %v2273
      %v2275 = vmul.f32 %v2224, 1.442695
      %v2276 = vpow.pop %v2275
      %v2277 = vmul.f32 %v2225, 1.442695
      %v2278 = vpow.pop %v2277
      %v2279 = vmul.f32 %v2226, 1.442695
      %v2280 = vpow.pop %v2279
      %v2281 = vmul.f32 %v2227, 1.442695
      %v2282 = vpow.pop %v2281
      %v2283 = vmul.f32 %v2228, 1.442695
      %v2284 = vpow.pop %v2283
      %v2285 = vmul.f32 %v2229, 1.442695
      %v2286 = vpow.pop %v2285
      %v2287 = vmul.f32 %v2230, 1.442695
      %v2288 = vpow.pop %v2287
      %v2289 = vmul.f32 %v2231, 1.442695
      %v2290 = vpow.pop %v2289
      %v2291 = vmul.f32 %v2232, 1.442695
      %v2292 = vpow.pop %v2291
      %v2293 = vmul.f32 %v2233, 1.442695
      %v2294 = vpow.pop %v2293
      %v2295 = vmul.f32 %v2234, 1.442695
      %v2296 = vpow.pop %v2295
      %v2297 = vmul.f32 %v2235, 1.442695
      %v2298 = vpow.pop %v2297
      %v2299 = vmul.f32 %v2236, 1.442695
      %v2300 = vpow.pop %v2299
      %v2301 = vadd.f32 %v2238, 1.0
      %v2302 = vadd.f32 %v2240, 1.0
      %v2303 = vadd.f32 %v2242, 1.0
      %v2304 = vadd.f32 %v2244, 1.0
      %v2305 = vadd.f32 %v2246, 1.0
      %v2306 = vadd.f32 %v2248, 1.0
      %v2307 = vadd.f32 %v2250, 1.0
      %v2308 = vadd.f32 %v2252, 1.0
      %v2309 = vadd.f32 %v2254, 1.0
      %v2310 = vadd.f32 %v2256, 1.0
      %v2311 = vadd.f32 %v2258, 1.0
      %v2312 = vadd.f32 %v2260, 1.0
      %v2313 = vadd.f32 %v2262, 1.0
      %v2314 = vadd.f32 %v2264, 1.0
      %v2315 = vadd.f32 %v2266, 1.0
      %v2316 = vadd.f32 %v2268, 1.0
      %v2317 = vadd.f32 %v2270, 1.0
      %v2318 = vadd.f32 %v2272, 1.0
      %v2319 = vadd.f32 %v2274, 1.0
      %v2320 = vadd.f32 %v2276, 1.0
      %v2321 = vadd.f32 %v2278, 1.0
      %v2322 = vadd.f32 %v2280, 1.0
      %v2323 = vadd.f32 %v2282, 1.0
      %v2324 = vadd.f32 %v2284, 1.0
      %v2325 = vadd.f32 %v2286, 1.0
      %v2326 = vadd.f32 %v2288, 1.0
      %v2327 = vadd.f32 %v2290, 1.0
      %v2328 = vadd.f32 %v2292, 1.0
      %v2329 = vadd.f32 %v2294, 1.0
      %v2330 = vadd.f32 %v2296, 1.0
      %v2331 = vadd.f32 %v2298, 1.0
      %v2332 = vadd.f32 %v2300, 1.0
      %v2333 = vrcp.pop %v2301
      %v2334 = vmul.f32 1.0, %v2333
      %v2335 = vrcp.pop %v2302
      %v2336 = vmul.f32 1.0, %v2335
      %v2337 = vrcp.pop %v2303
      %v2338 = vmul.f32 1.0, %v2337
      %v2339 = vrcp.pop %v2304
      %v2340 = vmul.f32 1.0, %v2339
      %v2341 = vrcp.pop %v2305
      %v2342 = vmul.f32 1.0, %v2341
      %v2343 = vrcp.pop %v2306
      %v2344 = vmul.f32 1.0, %v2343
      %v2345 = vrcp.pop %v2307
      %v2346 = vmul.f32 1.0, %v2345
      %v2347 = vrcp.pop %v2308
      %v2348 = vmul.f32 1.0, %v2347
      %v2349 = vrcp.pop %v2309
      %v2350 = vmul.f32 1.0, %v2349
      %v2351 = vrcp.pop %v2310
      %v2352 = vmul.f32 1.0, %v2351
      %v2353 = vrcp.pop %v2311
      %v2354 = vmul.f32 1.0, %v2353
      %v2355 = vrcp.pop %v2312
      %v2356 = vmul.f32 1.0, %v2355
      %v2357 = vrcp.pop %v2313
      %v2358 = vmul.f32 1.0, %v2357
      %v2359 = vrcp.pop %v2314
      %v2360 = vmul.f32 1.0, %v2359
      %v2361 = vrcp.pop %v2315
      %v2362 = vmul.f32 1.0, %v2361
      %v2363 = vrcp.pop %v2316
      %v2364 = vmul.f32 1.0, %v2363
      %v2365 = vrcp.pop %v2317
      %v2366 = vmul.f32 1.0, %v2365
      %v2367 = vrcp.pop %v2318
      %v2368 = vmul.f32 1.0, %v2367
      %v2369 = vrcp.pop %v2319
      %v2370 = vmul.f32 1.0, %v2369
      %v2371 = vrcp.pop %v2320
      %v2372 = vmul.f32 1.0, %v2371
      %v2373 = vrcp.pop %v2321
      %v2374 = vmul.f32 1.0, %v2373
      %v2375 = vrcp.pop %v2322
      %v2376 = vmul.f32 1.0, %v2375
      %v2377 = vrcp.pop %v2323
      %v2378 = vmul.f32 1.0, %v2377
      %v2379 = vrcp.pop %v2324
      %v2380 = vmul.f32 1.0, %v2379
      %v2381 = vrcp.pop %v2325
      %v2382 = vmul.f32 1.0, %v2381
      %v2383 = vrcp.pop %v2326
      %v2384 = vmul.f32 1.0, %v2383
      %v2385 = vrcp.pop %v2327
      %v2386 = vmul.f32 1.0, %v2385
      %v2387 = vrcp.pop %v2328
      %v2388 = vmul.f32 1.0, %v2387
      %v2389 = vrcp.pop %v2329
      %v2390 = vmul.f32 1.0, %v2389
      %v2391 = vrcp.pop %v2330
      %v2392 = vmul.f32 1.0, %v2391
      %v2393 = vrcp.pop %v2331
      %v2394 = vmul.f32 1.0, %v2393
      %v2395 = vrcp.pop %v2332
      %v2396 = vmul.f32 1.0, %v2395
      %v2397 = vmax.f32 %v2334, 0.0
      %v2398 = vmax.f32 %v2336, 0.0
      %v2399 = vmax.f32 %v2338, 0.0
      %v2400 = vmax.f32 %v2340, 0.0
      %v2401 = vmax.f32 %v2342, 0.0
      %v2402 = vmax.f32 %v2344, 0.0
      %v2403 = vmax.f32 %v2346, 0.0
      %v2404 = vmax.f32 %v2348, 0.0
      %v2405 = vmax.f32 %v2350, 0.0
      %v2406 = vmax.f32 %v2352, 0.0
      %v2407 = vmax.f32 %v2354, 0.0
      %v2408 = vmax.f32 %v2356, 0.0
      %v2409 = vmax.f32 %v2358, 0.0
      %v2410 = vmax.f32 %v2360, 0.0
      %v2411 = vmax.f32 %v2362, 0.0
      %v2412 = vmax.f32 %v2364, 0.0
      %v2413 = vmax.f32 %v2366, 0.0
      %v2414 = vmax.f32 %v2368, 0.0
      %v2415 = vmax.f32 %v2370, 0.0
      %v2416 = vmax.f32 %v2372, 0.0
      %v2417 = vmax.f32 %v2374, 0.0
      %v2418 = vmax.f32 %v2376, 0.0
      %v2419 = vmax.f32 %v2378, 0.0
      %v2420 = vmax.f32 %v2380, 0.0
      %v2421 = vmax.f32 %v2382, 0.0
      %v2422 = vmax.f32 %v2384, 0.0
      %v2423 = vmax.f32 %v2386, 0.0
      %v2424 = vmax.f32 %v2388, 0.0
      %v2425 = vmax.f32 %v2390, 0.0
      %v2426 = vmax.f32 %v2392, 0.0
      %v2427 = vmax.f32 %v2394, 0.0
      %v2428 = vmax.f32 %v2396, 0.0
      %v2429 = vmin.f32 %v2397, 1.0
      %v2430 = vmin.f32 %v2398, 1.0
      %v2431 = vmin.f32 %v2399, 1.0
      %v2432 = vmin.f32 %v2400, 1.0
      %v2433 = vmin.f32 %v2401, 1.0
      %v2434 = vmin.f32 %v2402, 1.0
      %v2435 = vmin.f32 %v2403, 1.0
      %v2436 = vmin.f32 %v2404, 1.0
      %v2437 = vmin.f32 %v2405, 1.0
      %v2438 = vmin.f32 %v2406, 1.0
      %v2439 = vmin.f32 %v2407, 1.0
      %v2440 = vmin.f32 %v2408, 1.0
      %v2441 = vmin.f32 %v2409, 1.0
      %v2442 = vmin.f32 %v2410, 1.0
      %v2443 = vmin.f32 %v2411, 1.0
      %v2444 = vmin.f32 %v2412, 1.0
      %v2445 = vmin.f32 %v2413, 1.0
      %v2446 = vmin.f32 %v2414, 1.0
      %v2447 = vmin.f32 %v2415, 1.0
      %v2448 = vmin.f32 %v2416, 1.0
      %v2449 = vmin.f32 %v2417, 1.0
      %v2450 = vmin.f32 %v2418, 1.0
      %v2451 = vmin.f32 %v2419, 1.0
      %v2452 = vmin.f32 %v2420, 1.0
      %v2453 = vmin.f32 %v2421, 1.0
      %v2454 = vmin.f32 %v2422, 1.0
      %v2455 = vmin.f32 %v2423, 1.0
      %v2456 = vmin.f32 %v2424, 1.0
      %v2457 = vmin.f32 %v2425, 1.0
      %v2458 = vmin.f32 %v2426, 1.0
      %v2459 = vmin.f32 %v2427, 1.0
      %v2460 = vmin.f32 %v2428, 1.0
      %vm2461 = vcmask 64512
      %2462 = vst.msk [vmem:[%s172] sm:$0xff] %vm2461, %v2429
      %2463 = vst.msk [vmem:[%s172 + $0x8] sm:$0xff] %vm2461, %v2430
      %2464 = vst.msk [vmem:[%s172 + $0x10] sm:$0xff] %vm2461, %v2431
      %2465 = vst.msk [vmem:[%s172 + $0x18] sm:$0xff] %vm2461, %v2432
      %2466 = vst.msk [vmem:[%s172 + $0x20] sm:$0xff] %vm2461, %v2433
      %2467 = vst.msk [vmem:[%s172 + $0x28] sm:$0xff] %vm2461, %v2434
      %2468 = vst.msk [vmem:[%s172 + $0x30] sm:$0xff] %vm2461, %v2435
      %2469 = vst.msk [vmem:[%s172 + $0x38] sm:$0xff] %vm2461, %v2436
      %2470 = vst.msk [vmem:[%s172 + $0x40] sm:$0xff] %vm2461, %v2437
      %2471 = vst.msk [vmem:[%s172 + $0x48] sm:$0xff] %vm2461, %v2438
      %2472 = vst.msk [vmem:[%s172 + $0x50] sm:$0xff] %vm2461, %v2439
      %2473 = vst.msk [vmem:[%s172 + $0x58] sm:$0xff] %vm2461, %v2440
      %2474 = vst.msk [vmem:[%s172 + $0x60] sm:$0xff] %vm2461, %v2441
      %2475 = vst.msk [vmem:[%s172 + $0x68] sm:$0xff] %vm2461, %v2442
      %2476 = vst.msk [vmem:[%s172 + $0x70] sm:$0xff] %vm2461, %v2443
      %2477 = vst.msk [vmem:[%s172 + $0x78] sm:$0xff] %vm2461, %v2444
      %2478 = vst.msk [vmem:[%s172 + $0x80] sm:$0xff] %vm2461, %v2445
      %2479 = vst.msk [vmem:[%s172 + $0x88] sm:$0xff] %vm2461, %v2446
      %2480 = vst.msk [vmem:[%s172 + $0x90] sm:$0xff] %vm2461, %v2447
      %2481 = vst.msk [vmem:[%s172 + $0x98] sm:$0xff] %vm2461, %v2448
      %2482 = vst.msk [vmem:[%s172 + $0xa0] sm:$0xff] %vm2461, %v2449
      %2483 = vst.msk [vmem:[%s172 + $0xa8] sm:$0xff] %vm2461, %v2450
      %2484 = vst.msk [vmem:[%s172 + $0xb0] sm:$0xff] %vm2461, %v2451
      %2485 = vst.msk [vmem:[%s172 + $0xb8] sm:$0xff] %vm2461, %v2452
      %2486 = vst.msk [vmem:[%s172 + $0xc0] sm:$0xff] %vm2461, %v2453
      %2487 = vst.msk [vmem:[%s172 + $0xc8] sm:$0xff] %vm2461, %v2454
      %2488 = vst.msk [vmem:[%s172 + $0xd0] sm:$0xff] %vm2461, %v2455
      %2489 = vst.msk [vmem:[%s172 + $0xd8] sm:$0xff] %vm2461, %v2456
      %2490 = vst.msk [vmem:[%s172 + $0xe0] sm:$0xff] %vm2461, %v2457
      %2491 = vst.msk [vmem:[%s172 + $0xe8] sm:$0xff] %vm2461, %v2458
      %2492 = vst.msk [vmem:[%s172 + $0xf0] sm:$0xff] %vm2461, %v2459
      %2493 = vst.msk [vmem:[%s172 + $0xf8] sm:$0xff] %vm2461, %v2460
      %s2494 = smul.u32 32, %s14
      %p2495 = scmp.lt.s32.totalorder %s2494, 63
      %s2496 = scalar_select %p2495, %s2494, 63
      %s2497 = smul.addr %s2496, 8
      %s2498 = scalar_lea.vmem %s3, %s2497
      // Predicated region
      $region33: #{tpu_custom_call.1} parent=31 // pred_check
        %p2499 = pneg %p100
      $region34: #{tpu_custom_call.1} parent=31 // pred_check_branch
        %2501 = sbr.rel (%p2499) target = $region36
      $region35: #{tpu_custom_call.1} parent=31 // pred_region
        %s2502 = smul.u32 32, %s14
      $region36: #{tpu_custom_call.1} parent=31 // pred_fallthru
        _
    $region32: #{tpu_custom_call.1} parent=5 // pred_fallthru
      _
    %p2503 = scmp.le.s32.totalorder 2, %s9
    // Predicated region
    $region37: #{tpu_custom_call.1} parent=5 // pred_check
      %p2504 = pneg %p2503
    $region38: #{tpu_custom_call.1} parent=5 // pred_check_branch
      %2506 = sbr.rel (%p2504) target = $region40
    $region39: #{tpu_custom_call.1} parent=5 // pred_region
      %s2507 = ssub.s32 %s9, 2
      // Predicated region
      $region41: #{tpu_custom_call.1} parent=39 // pred_check
        %p2508 = pneg %p106
      $region42: #{tpu_custom_call.1} parent=39 // pred_check_branch
        %2510 = sbr.rel (%p2508) target = $region44
      $region43: #{tpu_custom_call.1} parent=39 // pred_region
        %s2511 = smul.u32 32, %s15
        %p2512 = scmp.lt.s32.totalorder %s2511, 63
        %s2513 = scalar_select %p2512, %s2511, 63
        %s2514 = smul.addr %s2513, 8
        %s2515 = scalar_lea.vmem %s3, %s2514
      $region44: #{tpu_custom_call.1} parent=39 // pred_fallthru
        _
    $region40: #{tpu_custom_call.1} parent=5 // pred_fallthru
      _
  $region6: #{tpu_custom_call.1} parent=0 // loop_footer
    %s13 = sadd.s32 1, %s9
  $region7: #{tpu_custom_call.1} parent=0 // loop_footer_branch
    %8 = sbr.rel target = $region3
  $region8: #{tpu_custom_call.1} parent=0 // loop_exit
    _

</llo_original>
